<compile_context>
chip_gen: v7x
topology: tpu7x:2x2x1
jax: 0.10.0
libtpu: 0.0.40
codegen_flags: <defaults>
</compile_context>

<pallas_src>
import jax
import jax.numpy as jnp
from jax.experimental import pallas as pl
from jax.experimental.pallas import tpu as pltpu

EPS = 1e-3  # module spec: BatchNorm2d(16, eps=0.001)


def _fused_bn_add_kernel(x_ref, y_ref, g_ref, b_ref, o_ref):
    """o = BN_train(x; gamma, beta, eps) + y, all tensors resident in VMEM.

    x_ref, y_ref : (N, C, HW)  activation / residual (native dtype)
    g_ref, b_ref : (1, C, 1)   gamma / beta
    o_ref        : (N, C, HW)  output
    """
    x = x_ref[...].astype(jnp.float32)                       # (N, C, HW)
    cnt = jnp.float32(x.shape[0] * x.shape[2])

    # Per-channel batch mean (lane reduce -> XLU, then trivial N reduce).
    mean = jnp.sum(x, axis=2, keepdims=True).sum(axis=0, keepdims=True) / cnt   # (1,C,1)

    # Centered (two-pass) variance: no E[x^2]-E[x]^2 cancellation risk.
    xc = x - mean
    var = jnp.sum(xc * xc, axis=2, keepdims=True).sum(axis=0, keepdims=True) / cnt

    inv_std = jax.lax.rsqrt(var + jnp.float32(EPS))           # (1, C, 1), EUP
    a = g_ref[...].astype(jnp.float32) * inv_std              # (1, C, 1)
    b = b_ref[...].astype(jnp.float32)                        # (1, C, 1)

    o_ref[...] = (xc * a + b + y_ref[...].astype(jnp.float32)).astype(o_ref.dtype)


def batchnorm_add(x11, x3, gamma, beta):
    """Training-mode BatchNorm2d(x11) (batch stats, affine) + x3. NCHW in/out.

    Single fused Pallas kernel; assumes the (N, C, H*W) tensors fit in VMEM
    (true for the module's (1,16,112,112) shape: ~784 KiB per f32 tensor).
    """
    N, C, H, W = x11.shape
    HW = H * W

    # Free reshapes (no transpose, no dtype cast): NCHW -> (N, C, H*W).
    x_v = x11.reshape(N, C, HW)
    y_v = x3.reshape(N, C, HW)
    g_v = gamma.reshape(1, C, 1)
    b_v = beta.reshape(1, C, 1)

    out_dtype = x11.dtype
    arr_bytes = N * C * HW * jnp.dtype(out_dtype).itemsize
    # x, y, o (possibly double-buffered) + params + slack; capped so the same
    # code is safe on v7x's 64 MiB physical VMEM.
    vmem_limit = int(min(48 << 20, max(8 << 20, 8 * arr_bytes)))

    out = pl.pallas_call(
        _fused_bn_add_kernel,
        out_shape=jax.ShapeDtypeStruct((N, C, HW), out_dtype),
        grid=(1,),
        in_specs=[
            pl.BlockSpec((N, C, HW), lambda i: (0, 0, 0)),
            pl.BlockSpec((N, C, HW), lambda i: (0, 0, 0)),
            pl.BlockSpec((1, C, 1), lambda i: (0, 0, 0)),
            pl.BlockSpec((1, C, 1), lambda i: (0, 0, 0)),
        ],
        out_specs=pl.BlockSpec((N, C, HW), lambda i: (0, 0, 0)),
        compiler_params=pltpu.CompilerParams(
            dimension_semantics=("arbitrary",),
            vmem_limit_bytes=vmem_limit),
        # NOTE: pass input_output_aliases={1: 0} when the caller donates x3 to
        # write the result in place of the residual (saves one HBM buffer).
    )(x_v, y_v, g_v, b_v)

    return out.reshape(N, C, H, W)


def _reference(x11, x3, gamma, beta, eps=EPS):
    mean = jnp.mean(x11, axis=(0, 2, 3), keepdims=True)
    var = jnp.mean((x11 - mean) ** 2, axis=(0, 2, 3), keepdims=True)
    g = gamma.reshape(1, -1, 1, 1)
    b = beta.reshape(1, -1, 1, 1)
    return (x11 - mean) * jax.lax.rsqrt(var + eps) * g + b + x3


if __name__ == "__main__":
    key = jax.random.PRNGKey(0)
    k1, k2, k3, k4 = jax.random.split(key, 4)

    # Shapes from the module spec: x11, x3 are (1, 16, 112, 112) NCHW.
    N, C, H, W = 1, 16, 112, 112
    x11 = jax.random.normal(k1, (N, C, H, W), dtype=jnp.float32)
    x3 = jax.random.normal(k2, (N, C, H, W), dtype=jnp.float32)

    # PyTorch default-constructed BN has weight=1, bias=0; use non-trivial
    # deterministic values to exercise the affine path as well.
    gamma = 1.0 + 0.1 * jax.random.normal(k3, (C,), dtype=jnp.float32)
    beta = 0.1 * jax.random.normal(k4, (C,), dtype=jnp.float32)

    out = jax.jit(batchnorm_add)(x11, x3, gamma, beta)
    out = jax.block_until_ready(out)

    ref = _reference(x11, x3, gamma, beta)
    assert out.shape == (N, C, H, W)
    max_err = float(jnp.max(jnp.abs(out - ref)))
    assert jnp.allclose(out, ref, atol=1e-4, rtol=1e-4), f"mismatch vs reference: {max_err}"

    print("KERNEL_OK")
</pallas_src>

<mosaic_0001>
module attributes {stable_mosaic.version = 11 : i64} {
  func.func @_fused_bn_add_kernel(%arg0: i32, %arg1: memref<1x16x12544xf32, #tpu.memory_space<vmem>>, %arg2: memref<1x16x12544xf32, #tpu.memory_space<vmem>>, %arg3: memref<1x16x1xf32, #tpu.memory_space<vmem>>, %arg4: memref<1x16x1xf32, #tpu.memory_space<vmem>>, %arg5: memref<1x16x12544xf32, #tpu.memory_space<vmem>>) attributes {dimension_semantics = [#tpu.dimension_semantics<arbitrary>], iteration_bounds = array<i64: 1>, scalar_prefetch = 0 : i64, scratch_operands = 0 : i64, tpu.core_type = #tpu.core_type<tc>, window_params = [{pipeline_mode = #tpu.pipeline_mode<synchronous>, transform_indices = @transform_0, window_bounds = array<i64: 1, 16, 12544>}, {pipeline_mode = #tpu.pipeline_mode<synchronous>, transform_indices = @transform_1, window_bounds = array<i64: 1, 16, 12544>}, {pipeline_mode = #tpu.pipeline_mode<synchronous>, transform_indices = @transform_2, window_bounds = array<i64: 1, 16, 1>}, {pipeline_mode = #tpu.pipeline_mode<synchronous>, transform_indices = @transform_3, window_bounds = array<i64: 1, 16, 1>}, {pipeline_mode = #tpu.pipeline_mode<synchronous>, transform_indices = @transform_4, window_bounds = array<i64: 1, 16, 12544>}]} {
    %c0 = arith.constant 0 : index
    %c0_0 = arith.constant 0 : index
    %c0_1 = arith.constant 0 : index
    %0 = vector.load %arg1[%c0, %c0_0, %c0_1] : memref<1x16x12544xf32, #tpu.memory_space<vmem>>, vector<1x16x12544xf32>
    %cst = arith.constant dense<0.000000e+00> : vector<1x16xf32>
    %1 = vector.multi_reduction <add>, %0, %cst [2] : vector<1x16x12544xf32> to vector<1x16xf32>
    %2 = vector.shape_cast %1 : vector<1x16xf32> to vector<1x16x1xf32>
    %cst_2 = arith.constant dense<0.000000e+00> : vector<16x1xf32>
    %3 = vector.multi_reduction <add>, %2, %cst_2 [0] : vector<1x16x1xf32> to vector<16x1xf32>
    %4 = vector.shape_cast %3 : vector<16x1xf32> to vector<1x16x1xf32>
    %cst_3 = arith.constant 1.254400e+04 : f32
    %5 = vector.broadcast %cst_3 : f32 to vector<1x16x1xf32>
    %6 = arith.divf %4, %5 : vector<1x16x1xf32>
    %7 = vector.broadcast %6 : vector<1x16x1xf32> to vector<1x16x12544xf32>
    %8 = arith.subf %0, %7 : vector<1x16x12544xf32>
    %9 = arith.mulf %8, %8 : vector<1x16x12544xf32>
    %cst_4 = arith.constant dense<0.000000e+00> : vector<1x16xf32>
    %10 = vector.multi_reduction <add>, %9, %cst_4 [2] : vector<1x16x12544xf32> to vector<1x16xf32>
    %11 = vector.shape_cast %10 : vector<1x16xf32> to vector<1x16x1xf32>
    %cst_5 = arith.constant dense<0.000000e+00> : vector<16x1xf32>
    %12 = vector.multi_reduction <add>, %11, %cst_5 [0] : vector<1x16x1xf32> to vector<16x1xf32>
    %13 = vector.shape_cast %12 : vector<16x1xf32> to vector<1x16x1xf32>
    %cst_6 = arith.constant 1.254400e+04 : f32
    %14 = vector.broadcast %cst_6 : f32 to vector<1x16x1xf32>
    %15 = arith.divf %13, %14 : vector<1x16x1xf32>
    %cst_7 = arith.constant 1.000000e-03 : f32
    %16 = vector.broadcast %cst_7 : f32 to vector<1x16x1xf32>
    %17 = arith.addf %15, %16 : vector<1x16x1xf32>
    %18 = math.rsqrt %17 : vector<1x16x1xf32>
    %c0_8 = arith.constant 0 : index
    %c0_9 = arith.constant 0 : index
    %c0_10 = arith.constant 0 : index
    %19 = vector.load %arg3[%c0_8, %c0_9, %c0_10] : memref<1x16x1xf32, #tpu.memory_space<vmem>>, vector<1x16x1xf32>
    %20 = arith.mulf %19, %18 : vector<1x16x1xf32>
    %c0_11 = arith.constant 0 : index
    %c0_12 = arith.constant 0 : index
    %c0_13 = arith.constant 0 : index
    %21 = vector.load %arg4[%c0_11, %c0_12, %c0_13] : memref<1x16x1xf32, #tpu.memory_space<vmem>>, vector<1x16x1xf32>
    %22 = vector.broadcast %20 : vector<1x16x1xf32> to vector<1x16x12544xf32>
    %23 = arith.mulf %8, %22 : vector<1x16x12544xf32>
    %24 = vector.broadcast %21 : vector<1x16x1xf32> to vector<1x16x12544xf32>
    %25 = arith.addf %23, %24 : vector<1x16x12544xf32>
    %c0_14 = arith.constant 0 : index
    %c0_15 = arith.constant 0 : index
    %c0_16 = arith.constant 0 : index
    %26 = vector.load %arg2[%c0_14, %c0_15, %c0_16] : memref<1x16x12544xf32, #tpu.memory_space<vmem>>, vector<1x16x12544xf32>
    %27 = arith.addf %25, %26 : vector<1x16x12544xf32>
    %c0_17 = arith.constant 0 : index
    %c0_18 = arith.constant 0 : index
    %c0_19 = arith.constant 0 : index
    %28 = vector.load %arg5[%c0_17, %c0_18, %c0_19] : memref<1x16x12544xf32, #tpu.memory_space<vmem>>, vector<1x16x12544xf32>
    tpu.vector_store %arg5[%c0_17, %c0_18, %c0_19], %27 {strides = array<i32>} : memref<1x16x12544xf32, #tpu.memory_space<vmem>>, vector<1x16x12544xf32>,
    return
  }
  func.func @transform_0(%arg0: i32) -> (i32, i32, i32) {
    %c0_i32 = arith.constant 0 : i32
    %c0_i32_0 = arith.constant 0 : i32
    %c0_i32_1 = arith.constant 0 : i32
    %c0_i32_2 = arith.constant 0 : i32
    return %c0_i32, %c0_i32_0, %c0_i32_1 : i32, i32, i32
  }
  func.func @transform_1(%arg0: i32) -> (i32, i32, i32) {
    %c0_i32 = arith.constant 0 : i32
    %c0_i32_0 = arith.constant 0 : i32
    %c0_i32_1 = arith.constant 0 : i32
    %c0_i32_2 = arith.constant 0 : i32
    return %c0_i32, %c0_i32_0, %c0_i32_1 : i32, i32, i32
  }
  func.func @transform_2(%arg0: i32) -> (i32, i32, i32) {
    %c0_i32 = arith.constant 0 : i32
    %c0_i32_0 = arith.constant 0 : i32
    %c0_i32_1 = arith.constant 0 : i32
    %c0_i32_2 = arith.constant 0 : i32
    return %c0_i32, %c0_i32_0, %c0_i32_1 : i32, i32, i32
  }
  func.func @transform_3(%arg0: i32) -> (i32, i32, i32) {
    %c0_i32 = arith.constant 0 : i32
    %c0_i32_0 = arith.constant 0 : i32
    %c0_i32_1 = arith.constant 0 : i32
    %c0_i32_2 = arith.constant 0 : i32
    return %c0_i32, %c0_i32_0, %c0_i32_1 : i32, i32, i32
  }
  func.func @transform_4(%arg0: i32) -> (i32, i32, i32) {
    %c0_i32 = arith.constant 0 : i32
    %c0_i32_0 = arith.constant 0 : i32
    %c0_i32_1 = arith.constant 0 : i32
    %c0_i32_2 = arith.constant 0 : i32
    return %c0_i32, %c0_i32_0, %c0_i32_1 : i32, i32, i32
  }
}

</mosaic_0001>

<llo_original>
// kernel: batchnorm_add.1
$region0: #{batchnorm_add.1}
  #allocation0 [shape = 'u32[]', space=smem, size = 0x4, offset = 0x4, fixed_abs, tag = 'smem constant byte address 0x4 - core index']
  #allocation1 [shape = 'u32[144,128]{1,0:T(1,128)}', space=vmem, size = 0x12000, scoped, tag = 'internal scratch']
  %s0 = inlined_call_operand.vmem [shape: f32[1,16,12544], index: 0, kind: input, shape index: {}]
  %s1 = inlined_call_operand.vmem [shape: f32[1,16,12544], index: 1, kind: input, shape index: {}]
  %s2 = inlined_call_operand.vmem [shape: f32[1,16,1], index: 2, kind: input, shape index: {}]
  %s3 = inlined_call_operand.vmem [shape: f32[1,16,1], index: 3, kind: input, shape index: {}]
  %s4 = inlined_call_operand.vmem [shape: f32[1,16,12544], index: 4, kind: output, shape index: {}]
  %s5 = sld [smem:[#allocation0]]
  $region26: #{batchnorm_add.1} parent=0
    _
  %s7 = ssub.s32 1, %s5
  %s8 = scalar_select 0, %s7, %s5
  // Predicated region
  $region2: #{batchnorm_add.1} parent=0 // pred_check
    _
  $region3: #{batchnorm_add.1} parent=0 // pred_check_branch
    %10 = sbr.rel (0) target = $region5
  $region4: #{batchnorm_add.1} parent=0 // pred_region
    _
  $region5: #{batchnorm_add.1} parent=0 // pred_fallthru
    _
  // Predicated region
  $region6: #{batchnorm_add.1} parent=0 // pred_check
    _
  $region7: #{batchnorm_add.1} parent=0 // pred_check_branch
    %12 = sbr.rel (0) target = $region9
  $region8: #{batchnorm_add.1} parent=0 // pred_region
    _
  $region9: #{batchnorm_add.1} parent=0 // pred_fallthru
    _
  // Predicated region
  $region10: #{batchnorm_add.1} parent=0 // pred_check
    _
  $region11: #{batchnorm_add.1} parent=0 // pred_check_branch
    %14 = sbr.rel (0) target = $region13
  $region12: #{batchnorm_add.1} parent=0 // pred_region
    _
  $region13: #{batchnorm_add.1} parent=0 // pred_fallthru
    _
  // Predicated region
  $region14: #{batchnorm_add.1} parent=0 // pred_check
    _
  $region15: #{batchnorm_add.1} parent=0 // pred_check_branch
    %16 = sbr.rel (0) target = $region17
  $region16: #{batchnorm_add.1} parent=0 // pred_region
    _
  $region17: #{batchnorm_add.1} parent=0 // pred_fallthru
    _
  %v17 = vld [vmem:[%s0] sm:$0xff]
  %v18 = vld [vmem:[%s0 + $0x8] sm:$0xff]
  %v19 = vld [vmem:[%s0 + $0x10] sm:$0xff]
  %v20 = vld [vmem:[%s0 + $0x18] sm:$0xff]
  %v21 = vld [vmem:[%s0 + $0x20] sm:$0xff]
  %v22 = vld [vmem:[%s0 + $0x28] sm:$0xff]
  %v23 = vld [vmem:[%s0 + $0x30] sm:$0xff]
  %v24 = vld [vmem:[%s0 + $0x38] sm:$0xff]
  %v25 = vld [vmem:[%s0 + $0x40] sm:$0xff]
  %v26 = vld [vmem:[%s0 + $0x48] sm:$0xff]
  %v27 = vld [vmem:[%s0 + $0x50] sm:$0xff]
  %v28 = vld [vmem:[%s0 + $0x58] sm:$0xff]
  %v29 = vld [vmem:[%s0 + $0x60] sm:$0xff]
  %v30 = vld [vmem:[%s0 + $0x68] sm:$0xff]
  %v31 = vld [vmem:[%s0 + $0x70] sm:$0xff]
  %v32 = vld [vmem:[%s0 + $0x78] sm:$0xff]
  %v33 = vld [vmem:[%s0 + $0x80] sm:$0xff]
  %v34 = vld [vmem:[%s0 + $0x88] sm:$0xff]
  %v35 = vld [vmem:[%s0 + $0x90] sm:$0xff]
  %v36 = vld [vmem:[%s0 + $0x98] sm:$0xff]
  %v37 = vld [vmem:[%s0 + $0xa0] sm:$0xff]
  %v38 = vld [vmem:[%s0 + $0xa8] sm:$0xff]
  %v39 = vld [vmem:[%s0 + $0xb0] sm:$0xff]
  %v40 = vld [vmem:[%s0 + $0xb8] sm:$0xff]
  %v41 = vld [vmem:[%s0 + $0xc0] sm:$0xff]
  %v42 = vld [vmem:[%s0 + $0xc8] sm:$0xff]
  %v43 = vld [vmem:[%s0 + $0xd0] sm:$0xff]
  %v44 = vld [vmem:[%s0 + $0xd8] sm:$0xff]
  %v45 = vld [vmem:[%s0 + $0xe0] sm:$0xff]
  %v46 = vld [vmem:[%s0 + $0xe8] sm:$0xff]
  %v47 = vld [vmem:[%s0 + $0xf0] sm:$0xff]
  %v48 = vld [vmem:[%s0 + $0xf8] sm:$0xff]
  %v49 = vld [vmem:[%s0 + $0x100] sm:$0xff]
  %v50 = vld [vmem:[%s0 + $0x108] sm:$0xff]
  %v51 = vld [vmem:[%s0 + $0x110] sm:$0xff]
  %v52 = vld [vmem:[%s0 + $0x118] sm:$0xff]
  %v53 = vld [vmem:[%s0 + $0x120] sm:$0xff]
  %v54 = vld [vmem:[%s0 + $0x128] sm:$0xff]
  %v55 = vld [vmem:[%s0 + $0x130] sm:$0xff]
  %v56 = vld [vmem:[%s0 + $0x138] sm:$0xff]
  %v57 = vld [vmem:[%s0 + $0x140] sm:$0xff]
  %v58 = vld [vmem:[%s0 + $0x148] sm:$0xff]
  %v59 = vld [vmem:[%s0 + $0x150] sm:$0xff]
  %v60 = vld [vmem:[%s0 + $0x158] sm:$0xff]
  %v61 = vld [vmem:[%s0 + $0x160] sm:$0xff]
  %v62 = vld [vmem:[%s0 + $0x168] sm:$0xff]
  %v63 = vld [vmem:[%s0 + $0x170] sm:$0xff]
  %v64 = vld [vmem:[%s0 + $0x178] sm:$0xff]
  %v65 = vld [vmem:[%s0 + $0x180] sm:$0xff]
  %v66 = vld [vmem:[%s0 + $0x188] sm:$0xff]
  %v67 = vld [vmem:[%s0 + $0x190] sm:$0xff]
  %v68 = vld [vmem:[%s0 + $0x198] sm:$0xff]
  %v69 = vld [vmem:[%s0 + $0x1a0] sm:$0xff]
  %v70 = vld [vmem:[%s0 + $0x1a8] sm:$0xff]
  %v71 = vld [vmem:[%s0 + $0x1b0] sm:$0xff]
  %v72 = vld [vmem:[%s0 + $0x1b8] sm:$0xff]
  %v73 = vld [vmem:[%s0 + $0x1c0] sm:$0xff]
  %v74 = vld [vmem:[%s0 + $0x1c8] sm:$0xff]
  %v75 = vld [vmem:[%s0 + $0x1d0] sm:$0xff]
  %v76 = vld [vmem:[%s0 + $0x1d8] sm:$0xff]
  %v77 = vld [vmem:[%s0 + $0x1e0] sm:$0xff]
  %v78 = vld [vmem:[%s0 + $0x1e8] sm:$0xff]
  %v79 = vld [vmem:[%s0 + $0x1f0] sm:$0xff]
  %v80 = vld [vmem:[%s0 + $0x1f8] sm:$0xff]
  %v81 = vld [vmem:[%s0 + $0x200] sm:$0xff]
  %v82 = vld [vmem:[%s0 + $0x208] sm:$0xff]
  %v83 = vld [vmem:[%s0 + $0x210] sm:$0xff]
  %v84 = vld [vmem:[%s0 + $0x218] sm:$0xff]
  %v85 = vld [vmem:[%s0 + $0x220] sm:$0xff]
  %v86 = vld [vmem:[%s0 + $0x228] sm:$0xff]
  %v87 = vld [vmem:[%s0 + $0x230] sm:$0xff]
  %v88 = vld [vmem:[%s0 + $0x238] sm:$0xff]
  %v89 = vld [vmem:[%s0 + $0x240] sm:$0xff]
  %v90 = vld [vmem:[%s0 + $0x248] sm:$0xff]
  %v91 = vld [vmem:[%s0 + $0x250] sm:$0xff]
  %v92 = vld [vmem:[%s0 + $0x258] sm:$0xff]
  %v93 = vld [vmem:[%s0 + $0x260] sm:$0xff]
  %v94 = vld [vmem:[%s0 + $0x268] sm:$0xff]
  %v95 = vld [vmem:[%s0 + $0x270] sm:$0xff]
  %v96 = vld [vmem:[%s0 + $0x278] sm:$0xff]
  %v97 = vld [vmem:[%s0 + $0x280] sm:$0xff]
  %v98 = vld [vmem:[%s0 + $0x288] sm:$0xff]
  %v99 = vld [vmem:[%s0 + $0x290] sm:$0xff]
  %v100 = vld [vmem:[%s0 + $0x298] sm:$0xff]
  %v101 = vld [vmem:[%s0 + $0x2a0] sm:$0xff]
  %v102 = vld [vmem:[%s0 + $0x2a8] sm:$0xff]
  %v103 = vld [vmem:[%s0 + $0x2b0] sm:$0xff]
  %v104 = vld [vmem:[%s0 + $0x2b8] sm:$0xff]
  %v105 = vld [vmem:[%s0 + $0x2c0] sm:$0xff]
  %v106 = vld [vmem:[%s0 + $0x2c8] sm:$0xff]
  %v107 = vld [vmem:[%s0 + $0x2d0] sm:$0xff]
  %v108 = vld [vmem:[%s0 + $0x2d8] sm:$0xff]
  %v109 = vld [vmem:[%s0 + $0x2e0] sm:$0xff]
  %v110 = vld [vmem:[%s0 + $0x2e8] sm:$0xff]
  %v111 = vld [vmem:[%s0 + $0x2f0] sm:$0xff]
  %v112 = vld [vmem:[%s0 + $0x2f8] sm:$0xff]
  %v113 = vld [vmem:[%s0 + $0x300] sm:$0xff]
  %v114 = vld [vmem:[%s0 + $0x308] sm:$0xff]
  %v115 = vld [vmem:[%s0 + $0x310] sm:$0xff]
  %v116 = vld [vmem:[%s0 + $0x318] sm:$0xff]
  %v117 = vld [vmem:[%s0 + $0x320] sm:$0xff]
  %v118 = vld [vmem:[%s0 + $0x328] sm:$0xff]
  %v119 = vld [vmem:[%s0 + $0x330] sm:$0xff]
  %v120 = vld [vmem:[%s0 + $0x338] sm:$0xff]
  %v121 = vld [vmem:[%s0 + $0x340] sm:$0xff]
  %v122 = vld [vmem:[%s0 + $0x348] sm:$0xff]
  %v123 = vld [vmem:[%s0 + $0x350] sm:$0xff]
  %v124 = vld [vmem:[%s0 + $0x358] sm:$0xff]
  %v125 = vld [vmem:[%s0 + $0x360] sm:$0xff]
  %v126 = vld [vmem:[%s0 + $0x368] sm:$0xff]
  %v127 = vld [vmem:[%s0 + $0x370] sm:$0xff]
  %v128 = vld [vmem:[%s0 + $0x378] sm:$0xff]
  %v129 = vld [vmem:[%s0 + $0x380] sm:$0xff]
  %v130 = vld [vmem:[%s0 + $0x388] sm:$0xff]
  %v131 = vld [vmem:[%s0 + $0x390] sm:$0xff]
  %v132 = vld [vmem:[%s0 + $0x398] sm:$0xff]
  %v133 = vld [vmem:[%s0 + $0x3a0] sm:$0xff]
  %v134 = vld [vmem:[%s0 + $0x3a8] sm:$0xff]
  %v135 = vld [vmem:[%s0 + $0x3b0] sm:$0xff]
  %v136 = vld [vmem:[%s0 + $0x3b8] sm:$0xff]
  %v137 = vld [vmem:[%s0 + $0x3c0] sm:$0xff]
  %v138 = vld [vmem:[%s0 + $0x3c8] sm:$0xff]
  %v139 = vld [vmem:[%s0 + $0x3d0] sm:$0xff]
  %v140 = vld [vmem:[%s0 + $0x3d8] sm:$0xff]
  %v141 = vld [vmem:[%s0 + $0x3e0] sm:$0xff]
  %v142 = vld [vmem:[%s0 + $0x3e8] sm:$0xff]
  %v143 = vld [vmem:[%s0 + $0x3f0] sm:$0xff]
  %v144 = vld [vmem:[%s0 + $0x3f8] sm:$0xff]
  %v145 = vld [vmem:[%s0 + $0x400] sm:$0xff]
  %v146 = vld [vmem:[%s0 + $0x408] sm:$0xff]
  %v147 = vld [vmem:[%s0 + $0x410] sm:$0xff]
  %v148 = vld [vmem:[%s0 + $0x418] sm:$0xff]
  %v149 = vld [vmem:[%s0 + $0x420] sm:$0xff]
  %v150 = vld [vmem:[%s0 + $0x428] sm:$0xff]
  %v151 = vld [vmem:[%s0 + $0x430] sm:$0xff]
  %v152 = vld [vmem:[%s0 + $0x438] sm:$0xff]
  %v153 = vld [vmem:[%s0 + $0x440] sm:$0xff]
  %v154 = vld [vmem:[%s0 + $0x448] sm:$0xff]
  %v155 = vld [vmem:[%s0 + $0x450] sm:$0xff]
  %v156 = vld [vmem:[%s0 + $0x458] sm:$0xff]
  %v157 = vld [vmem:[%s0 + $0x460] sm:$0xff]
  %v158 = vld [vmem:[%s0 + $0x468] sm:$0xff]
  %v159 = vld [vmem:[%s0 + $0x470] sm:$0xff]
  %v160 = vld [vmem:[%s0 + $0x478] sm:$0xff]
  %v161 = vld [vmem:[%s0 + $0x480] sm:$0xff]
  %v162 = vld [vmem:[%s0 + $0x488] sm:$0xff]
  %v163 = vld [vmem:[%s0 + $0x490] sm:$0xff]
  %v164 = vld [vmem:[%s0 + $0x498] sm:$0xff]
  %v165 = vld [vmem:[%s0 + $0x4a0] sm:$0xff]
  %v166 = vld [vmem:[%s0 + $0x4a8] sm:$0xff]
  %v167 = vld [vmem:[%s0 + $0x4b0] sm:$0xff]
  %v168 = vld [vmem:[%s0 + $0x4b8] sm:$0xff]
  %v169 = vld [vmem:[%s0 + $0x4c0] sm:$0xff]
  %v170 = vld [vmem:[%s0 + $0x4c8] sm:$0xff]
  %v171 = vld [vmem:[%s0 + $0x4d0] sm:$0xff]
  %v172 = vld [vmem:[%s0 + $0x4d8] sm:$0xff]
  %v173 = vld [vmem:[%s0 + $0x4e0] sm:$0xff]
  %v174 = vld [vmem:[%s0 + $0x4e8] sm:$0xff]
  %v175 = vld [vmem:[%s0 + $0x4f0] sm:$0xff]
  %v176 = vld [vmem:[%s0 + $0x4f8] sm:$0xff]
  %v177 = vld [vmem:[%s0 + $0x500] sm:$0xff]
  %v178 = vld [vmem:[%s0 + $0x508] sm:$0xff]
  %v179 = vld [vmem:[%s0 + $0x510] sm:$0xff]
  %v180 = vld [vmem:[%s0 + $0x518] sm:$0xff]
  %v181 = vld [vmem:[%s0 + $0x520] sm:$0xff]
  %v182 = vld [vmem:[%s0 + $0x528] sm:$0xff]
  %v183 = vld [vmem:[%s0 + $0x530] sm:$0xff]
  %v184 = vld [vmem:[%s0 + $0x538] sm:$0xff]
  %v185 = vld [vmem:[%s0 + $0x540] sm:$0xff]
  %v186 = vld [vmem:[%s0 + $0x548] sm:$0xff]
  %v187 = vld [vmem:[%s0 + $0x550] sm:$0xff]
  %v188 = vld [vmem:[%s0 + $0x558] sm:$0xff]
  %v189 = vld [vmem:[%s0 + $0x560] sm:$0xff]
  %v190 = vld [vmem:[%s0 + $0x568] sm:$0xff]
  %v191 = vld [vmem:[%s0 + $0x570] sm:$0xff]
  %v192 = vld [vmem:[%s0 + $0x578] sm:$0xff]
  %v193 = vld [vmem:[%s0 + $0x580] sm:$0xff]
  %v194 = vld [vmem:[%s0 + $0x588] sm:$0xff]
  %v195 = vld [vmem:[%s0 + $0x590] sm:$0xff]
  %v196 = vld [vmem:[%s0 + $0x598] sm:$0xff]
  %v197 = vld [vmem:[%s0 + $0x5a0] sm:$0xff]
  %v198 = vld [vmem:[%s0 + $0x5a8] sm:$0xff]
  %v199 = vld [vmem:[%s0 + $0x5b0] sm:$0xff]
  %v200 = vld [vmem:[%s0 + $0x5b8] sm:$0xff]
  %v201 = vld [vmem:[%s0 + $0x5c0] sm:$0xff]
  %v202 = vld [vmem:[%s0 + $0x5c8] sm:$0xff]
  %v203 = vld [vmem:[%s0 + $0x5d0] sm:$0xff]
  %v204 = vld [vmem:[%s0 + $0x5d8] sm:$0xff]
  %v205 = vld [vmem:[%s0 + $0x5e0] sm:$0xff]
  %v206 = vld [vmem:[%s0 + $0x5e8] sm:$0xff]
  %v207 = vld [vmem:[%s0 + $0x5f0] sm:$0xff]
  %v208 = vld [vmem:[%s0 + $0x5f8] sm:$0xff]
  %v209 = vld [vmem:[%s0 + $0x600] sm:$0xff]
  %v210 = vld [vmem:[%s0 + $0x608] sm:$0xff]
  %v211 = vld [vmem:[%s0 + $0x610] sm:$0xff]
  %v212 = vld [vmem:[%s0 + $0x618] sm:$0xff]
  %v213 = vadd.f32 %v17, %v18
  %v214 = vadd.f32 %v213, %v19
  %v215 = vadd.f32 %v214, %v20
  %v216 = vadd.f32 %v215, %v21
  %v217 = vadd.f32 %v216, %v22
  %v218 = vadd.f32 %v217, %v23
  %v219 = vadd.f32 %v218, %v24
  %v220 = vadd.f32 %v219, %v25
  %v221 = vadd.f32 %v220, %v26
  %v222 = vadd.f32 %v221, %v27
  %v223 = vadd.f32 %v222, %v28
  %v224 = vadd.f32 %v223, %v29
  %v225 = vadd.f32 %v224, %v30
  %v226 = vadd.f32 %v225, %v31
  %v227 = vadd.f32 %v226, %v32
  %v228 = vadd.f32 %v227, %v33
  %v229 = vadd.f32 %v228, %v34
  %v230 = vadd.f32 %v229, %v35
  %v231 = vadd.f32 %v230, %v36
  %v232 = vadd.f32 %v231, %v37
  %v233 = vadd.f32 %v232, %v38
  %v234 = vadd.f32 %v233, %v39
  %v235 = vadd.f32 %v234, %v40
  %v236 = vadd.f32 %v235, %v41
  %v237 = vadd.f32 %v236, %v42
  %v238 = vadd.f32 %v237, %v43
  %v239 = vadd.f32 %v238, %v44
  %v240 = vadd.f32 %v239, %v45
  %v241 = vadd.f32 %v240, %v46
  %v242 = vadd.f32 %v241, %v47
  %v243 = vadd.f32 %v242, %v48
  %v244 = vadd.f32 %v243, %v49
  %v245 = vadd.f32 %v244, %v50
  %v246 = vadd.f32 %v245, %v51
  %v247 = vadd.f32 %v246, %v52
  %v248 = vadd.f32 %v247, %v53
  %v249 = vadd.f32 %v248, %v54
  %v250 = vadd.f32 %v249, %v55
  %v251 = vadd.f32 %v250, %v56
  %v252 = vadd.f32 %v251, %v57
  %v253 = vadd.f32 %v252, %v58
  %v254 = vadd.f32 %v253, %v59
  %v255 = vadd.f32 %v254, %v60
  %v256 = vadd.f32 %v255, %v61
  %v257 = vadd.f32 %v256, %v62
  %v258 = vadd.f32 %v257, %v63
  %v259 = vadd.f32 %v258, %v64
  %v260 = vadd.f32 %v259, %v65
  %v261 = vadd.f32 %v260, %v66
  %v262 = vadd.f32 %v261, %v67
  %v263 = vadd.f32 %v262, %v68
  %v264 = vadd.f32 %v263, %v69
  %v265 = vadd.f32 %v264, %v70
  %v266 = vadd.f32 %v265, %v71
  %v267 = vadd.f32 %v266, %v72
  %v268 = vadd.f32 %v267, %v73
  %v269 = vadd.f32 %v268, %v74
  %v270 = vadd.f32 %v269, %v75
  %v271 = vadd.f32 %v270, %v76
  %v272 = vadd.f32 %v271, %v77
  %v273 = vadd.f32 %v272, %v78
  %v274 = vadd.f32 %v273, %v79
  %v275 = vadd.f32 %v274, %v80
  %v276 = vadd.f32 %v275, %v81
  %v277 = vadd.f32 %v276, %v82
  %v278 = vadd.f32 %v277, %v83
  %v279 = vadd.f32 %v278, %v84
  %v280 = vadd.f32 %v279, %v85
  %v281 = vadd.f32 %v280, %v86
  %v282 = vadd.f32 %v281, %v87
  %v283 = vadd.f32 %v282, %v88
  %v284 = vadd.f32 %v283, %v89
  %v285 = vadd.f32 %v284, %v90
  %v286 = vadd.f32 %v285, %v91
  %v287 = vadd.f32 %v286, %v92
  %v288 = vadd.f32 %v287, %v93
  %v289 = vadd.f32 %v288, %v94
  %v290 = vadd.f32 %v289, %v95
  %v291 = vadd.f32 %v290, %v96
  %v292 = vadd.f32 %v291, %v97
  %v293 = vadd.f32 %v292, %v98
  %v294 = vadd.f32 %v293, %v99
  %v295 = vadd.f32 %v294, %v100
  %v296 = vadd.f32 %v295, %v101
  %v297 = vadd.f32 %v296, %v102
  %v298 = vadd.f32 %v297, %v103
  %v299 = vadd.f32 %v298, %v104
  %v300 = vadd.f32 %v299, %v105
  %v301 = vadd.f32 %v300, %v106
  %v302 = vadd.f32 %v301, %v107
  %v303 = vadd.f32 %v302, %v108
  %v304 = vadd.f32 %v303, %v109
  %v305 = vadd.f32 %v304, %v110
  %v306 = vadd.f32 %v305, %v111
  %v307 = vadd.f32 %v306, %v112
  %v308 = vadd.f32 %v307, %v113
  %v309 = vadd.f32 %v308, %v114
  %310 = vadd.xlane.f32.xlu0 %v309
  %v311 = vpop.xlane.xlu0 %310
  %v312 = vadd.f32 %v115, %v116
  %v313 = vadd.f32 %v312, %v117
  %v314 = vadd.f32 %v313, %v118
  %v315 = vadd.f32 %v314, %v119
  %v316 = vadd.f32 %v315, %v120
  %v317 = vadd.f32 %v316, %v121
  %v318 = vadd.f32 %v317, %v122
  %v319 = vadd.f32 %v318, %v123
  %v320 = vadd.f32 %v319, %v124
  %v321 = vadd.f32 %v320, %v125
  %v322 = vadd.f32 %v321, %v126
  %v323 = vadd.f32 %v322, %v127
  %v324 = vadd.f32 %v323, %v128
  %v325 = vadd.f32 %v324, %v129
  %v326 = vadd.f32 %v325, %v130
  %v327 = vadd.f32 %v326, %v131
  %v328 = vadd.f32 %v327, %v132
  %v329 = vadd.f32 %v328, %v133
  %v330 = vadd.f32 %v329, %v134
  %v331 = vadd.f32 %v330, %v135
  %v332 = vadd.f32 %v331, %v136
  %v333 = vadd.f32 %v332, %v137
  %v334 = vadd.f32 %v333, %v138
  %v335 = vadd.f32 %v334, %v139
  %v336 = vadd.f32 %v335, %v140
  %v337 = vadd.f32 %v336, %v141
  %v338 = vadd.f32 %v337, %v142
  %v339 = vadd.f32 %v338, %v143
  %v340 = vadd.f32 %v339, %v144
  %v341 = vadd.f32 %v340, %v145
  %v342 = vadd.f32 %v341, %v146
  %v343 = vadd.f32 %v342, %v147
  %v344 = vadd.f32 %v343, %v148
  %v345 = vadd.f32 %v344, %v149
  %v346 = vadd.f32 %v345, %v150
  %v347 = vadd.f32 %v346, %v151
  %v348 = vadd.f32 %v347, %v152
  %v349 = vadd.f32 %v348, %v153
  %v350 = vadd.f32 %v349, %v154
  %v351 = vadd.f32 %v350, %v155
  %v352 = vadd.f32 %v351, %v156
  %v353 = vadd.f32 %v352, %v157
  %v354 = vadd.f32 %v353, %v158
  %v355 = vadd.f32 %v354, %v159
  %v356 = vadd.f32 %v355, %v160
  %v357 = vadd.f32 %v356, %v161
  %v358 = vadd.f32 %v357, %v162
  %v359 = vadd.f32 %v358, %v163
  %v360 = vadd.f32 %v359, %v164
  %v361 = vadd.f32 %v360, %v165
  %v362 = vadd.f32 %v361, %v166
  %v363 = vadd.f32 %v362, %v167
  %v364 = vadd.f32 %v363, %v168
  %v365 = vadd.f32 %v364, %v169
  %v366 = vadd.f32 %v365, %v170
  %v367 = vadd.f32 %v366, %v171
  %v368 = vadd.f32 %v367, %v172
  %v369 = vadd.f32 %v368, %v173
  %v370 = vadd.f32 %v369, %v174
  %v371 = vadd.f32 %v370, %v175
  %v372 = vadd.f32 %v371, %v176
  %v373 = vadd.f32 %v372, %v177
  %v374 = vadd.f32 %v373, %v178
  %v375 = vadd.f32 %v374, %v179
  %v376 = vadd.f32 %v375, %v180
  %v377 = vadd.f32 %v376, %v181
  %v378 = vadd.f32 %v377, %v182
  %v379 = vadd.f32 %v378, %v183
  %v380 = vadd.f32 %v379, %v184
  %v381 = vadd.f32 %v380, %v185
  %v382 = vadd.f32 %v381, %v186
  %v383 = vadd.f32 %v382, %v187
  %v384 = vadd.f32 %v383, %v188
  %v385 = vadd.f32 %v384, %v189
  %v386 = vadd.f32 %v385, %v190
  %v387 = vadd.f32 %v386, %v191
  %v388 = vadd.f32 %v387, %v192
  %v389 = vadd.f32 %v388, %v193
  %v390 = vadd.f32 %v389, %v194
  %v391 = vadd.f32 %v390, %v195
  %v392 = vadd.f32 %v391, %v196
  %v393 = vadd.f32 %v392, %v197
  %v394 = vadd.f32 %v393, %v198
  %v395 = vadd.f32 %v394, %v199
  %v396 = vadd.f32 %v395, %v200
  %v397 = vadd.f32 %v396, %v201
  %v398 = vadd.f32 %v397, %v202
  %v399 = vadd.f32 %v398, %v203
  %v400 = vadd.f32 %v399, %v204
  %v401 = vadd.f32 %v400, %v205
  %v402 = vadd.f32 %v401, %v206
  %v403 = vadd.f32 %v402, %v207
  %v404 = vadd.f32 %v403, %v208
  %v405 = vadd.f32 %v404, %v209
  %v406 = vadd.f32 %v405, %v210
  %v407 = vadd.f32 %v406, %v211
  %v408 = vadd.f32 %v407, %v212
  %409 = vadd.xlane.f32.xlu0 %v408
  %v410 = vpop.xlane.xlu0 %409
  %v411 = vadd.f32 %v311, 0.0
  %v412 = vadd.f32 %v410, 0.0
  %v413 = vrcp.pop 12544.0
  %v414 = vmul.f32 %v411, %v413
  %v415 = vmul.f32 %v412, %v413
  %v416 = vsub.f32 %v17, %v414
  %v417 = vsub.f32 %v18, %v414
  %v418 = vsub.f32 %v19, %v414
  %v419 = vsub.f32 %v20, %v414
  %v420 = vsub.f32 %v21, %v414
  %v421 = vsub.f32 %v22, %v414
  %v422 = vsub.f32 %v23, %v414
  %v423 = vsub.f32 %v24, %v414
  %v424 = vsub.f32 %v25, %v414
  %v425 = vsub.f32 %v26, %v414
  %v426 = vsub.f32 %v27, %v414
  %v427 = vsub.f32 %v28, %v414
  %v428 = vsub.f32 %v29, %v414
  %v429 = vsub.f32 %v30, %v414
  %v430 = vsub.f32 %v31, %v414
  %v431 = vsub.f32 %v32, %v414
  %v432 = vsub.f32 %v33, %v414
  %v433 = vsub.f32 %v34, %v414
  %v434 = vsub.f32 %v35, %v414
  %v435 = vsub.f32 %v36, %v414
  %v436 = vsub.f32 %v37, %v414
  %v437 = vsub.f32 %v38, %v414
  %v438 = vsub.f32 %v39, %v414
  %v439 = vsub.f32 %v40, %v414
  %v440 = vsub.f32 %v41, %v414
  %v441 = vsub.f32 %v42, %v414
  %v442 = vsub.f32 %v43, %v414
  %v443 = vsub.f32 %v44, %v414
  %v444 = vsub.f32 %v45, %v414
  %v445 = vsub.f32 %v46, %v414
  %v446 = vsub.f32 %v47, %v414
  %v447 = vsub.f32 %v48, %v414
  %v448 = vsub.f32 %v49, %v414
  %v449 = vsub.f32 %v50, %v414
  %v450 = vsub.f32 %v51, %v414
  %v451 = vsub.f32 %v52, %v414
  %v452 = vsub.f32 %v53, %v414
  %v453 = vsub.f32 %v54, %v414
  %v454 = vsub.f32 %v55, %v414
  %v455 = vsub.f32 %v56, %v414
  %v456 = vsub.f32 %v57, %v414
  %v457 = vsub.f32 %v58, %v414
  %v458 = vsub.f32 %v59, %v414
  %v459 = vsub.f32 %v60, %v414
  %v460 = vsub.f32 %v61, %v414
  %v461 = vsub.f32 %v62, %v414
  %v462 = vsub.f32 %v63, %v414
  %v463 = vsub.f32 %v64, %v414
  %v464 = vsub.f32 %v65, %v414
  %v465 = vsub.f32 %v66, %v414
  %v466 = vsub.f32 %v67, %v414
  %v467 = vsub.f32 %v68, %v414
  %v468 = vsub.f32 %v69, %v414
  %v469 = vsub.f32 %v70, %v414
  %v470 = vsub.f32 %v71, %v414
  %v471 = vsub.f32 %v72, %v414
  %v472 = vsub.f32 %v73, %v414
  %v473 = vsub.f32 %v74, %v414
  %v474 = vsub.f32 %v75, %v414
  %v475 = vsub.f32 %v76, %v414
  %v476 = vsub.f32 %v77, %v414
  %v477 = vsub.f32 %v78, %v414
  %v478 = vsub.f32 %v79, %v414
  %v479 = vsub.f32 %v80, %v414
  %v480 = vsub.f32 %v81, %v414
  %v481 = vsub.f32 %v82, %v414
  %v482 = vsub.f32 %v83, %v414
  %v483 = vsub.f32 %v84, %v414
  %v484 = vsub.f32 %v85, %v414
  %v485 = vsub.f32 %v86, %v414
  %v486 = vsub.f32 %v87, %v414
  %v487 = vsub.f32 %v88, %v414
  %v488 = vsub.f32 %v89, %v414
  %v489 = vsub.f32 %v90, %v414
  %v490 = vsub.f32 %v91, %v414
  %v491 = vsub.f32 %v92, %v414
  %v492 = vsub.f32 %v93, %v414
  %v493 = vsub.f32 %v94, %v414
  %v494 = vsub.f32 %v95, %v414
  %v495 = vsub.f32 %v96, %v414
  %v496 = vsub.f32 %v97, %v414
  %v497 = vsub.f32 %v98, %v414
  %v498 = vsub.f32 %v99, %v414
  %v499 = vsub.f32 %v100, %v414
  %v500 = vsub.f32 %v101, %v414
  %v501 = vsub.f32 %v102, %v414
  %v502 = vsub.f32 %v103, %v414
  %v503 = vsub.f32 %v104, %v414
  %v504 = vsub.f32 %v105, %v414
  %v505 = vsub.f32 %v106, %v414
  %v506 = vsub.f32 %v107, %v414
  %v507 = vsub.f32 %v108, %v414
  %v508 = vsub.f32 %v109, %v414
  %v509 = vsub.f32 %v110, %v414
  %v510 = vsub.f32 %v111, %v414
  %v511 = vsub.f32 %v112, %v414
  %v512 = vsub.f32 %v113, %v414
  %v513 = vsub.f32 %v114, %v414
  %v514 = vsub.f32 %v115, %v415
  %v515 = vsub.f32 %v116, %v415
  %v516 = vsub.f32 %v117, %v415
  %v517 = vsub.f32 %v118, %v415
  %v518 = vsub.f32 %v119, %v415
  %v519 = vsub.f32 %v120, %v415
  %v520 = vsub.f32 %v121, %v415
  %v521 = vsub.f32 %v122, %v415
  %v522 = vsub.f32 %v123, %v415
  %v523 = vsub.f32 %v124, %v415
  %v524 = vsub.f32 %v125, %v415
  %v525 = vsub.f32 %v126, %v415
  %v526 = vsub.f32 %v127, %v415
  %v527 = vsub.f32 %v128, %v415
  %v528 = vsub.f32 %v129, %v415
  %v529 = vsub.f32 %v130, %v415
  %v530 = vsub.f32 %v131, %v415
  %v531 = vsub.f32 %v132, %v415
  %v532 = vsub.f32 %v133, %v415
  %v533 = vsub.f32 %v134, %v415
  %v534 = vsub.f32 %v135, %v415
  %v535 = vsub.f32 %v136, %v415
  %v536 = vsub.f32 %v137, %v415
  %v537 = vsub.f32 %v138, %v415
  %v538 = vsub.f32 %v139, %v415
  %v539 = vsub.f32 %v140, %v415
  %v540 = vsub.f32 %v141, %v415
  %v541 = vsub.f32 %v142, %v415
  %v542 = vsub.f32 %v143, %v415
  %v543 = vsub.f32 %v144, %v415
  %v544 = vsub.f32 %v145, %v415
  %v545 = vsub.f32 %v146, %v415
  %v546 = vsub.f32 %v147, %v415
  %v547 = vsub.f32 %v148, %v415
  %v548 = vsub.f32 %v149, %v415
  %v549 = vsub.f32 %v150, %v415
  %v550 = vsub.f32 %v151, %v415
  %v551 = vsub.f32 %v152, %v415
  %v552 = vsub.f32 %v153, %v415
  %v553 = vsub.f32 %v154, %v415
  %v554 = vsub.f32 %v155, %v415
  %v555 = vsub.f32 %v156, %v415
  %v556 = vsub.f32 %v157, %v415
  %v557 = vsub.f32 %v158, %v415
  %v558 = vsub.f32 %v159, %v415
  %v559 = vsub.f32 %v160, %v415
  %v560 = vsub.f32 %v161, %v415
  %v561 = vsub.f32 %v162, %v415
  %v562 = vsub.f32 %v163, %v415
  %v563 = vsub.f32 %v164, %v415
  %v564 = vsub.f32 %v165, %v415
  %v565 = vsub.f32 %v166, %v415
  %v566 = vsub.f32 %v167, %v415
  %v567 = vsub.f32 %v168, %v415
  %v568 = vsub.f32 %v169, %v415
  %v569 = vsub.f32 %v170, %v415
  %v570 = vsub.f32 %v171, %v415
  %v571 = vsub.f32 %v172, %v415
  %v572 = vsub.f32 %v173, %v415
  %v573 = vsub.f32 %v174, %v415
  %v574 = vsub.f32 %v175, %v415
  %v575 = vsub.f32 %v176, %v415
  %v576 = vsub.f32 %v177, %v415
  %v577 = vsub.f32 %v178, %v415
  %v578 = vsub.f32 %v179, %v415
  %v579 = vsub.f32 %v180, %v415
  %v580 = vsub.f32 %v181, %v415
  %v581 = vsub.f32 %v182, %v415
  %v582 = vsub.f32 %v183, %v415
  %v583 = vsub.f32 %v184, %v415
  %v584 = vsub.f32 %v185, %v415
  %v585 = vsub.f32 %v186, %v415
  %v586 = vsub.f32 %v187, %v415
  %v587 = vsub.f32 %v188, %v415
  %v588 = vsub.f32 %v189, %v415
  %v589 = vsub.f32 %v190, %v415
  %v590 = vsub.f32 %v191, %v415
  %v591 = vsub.f32 %v192, %v415
  %v592 = vsub.f32 %v193, %v415
  %v593 = vsub.f32 %v194, %v415
  %v594 = vsub.f32 %v195, %v415
  %v595 = vsub.f32 %v196, %v415
  %v596 = vsub.f32 %v197, %v415
  %v597 = vsub.f32 %v198, %v415
  %v598 = vsub.f32 %v199, %v415
  %v599 = vsub.f32 %v200, %v415
  %v600 = vsub.f32 %v201, %v415
  %v601 = vsub.f32 %v202, %v415
  %v602 = vsub.f32 %v203, %v415
  %v603 = vsub.f32 %v204, %v415
  %v604 = vsub.f32 %v205, %v415
  %v605 = vsub.f32 %v206, %v415
  %v606 = vsub.f32 %v207, %v415
  %v607 = vsub.f32 %v208, %v415
  %v608 = vsub.f32 %v209, %v415
  %v609 = vsub.f32 %v210, %v415
  %v610 = vsub.f32 %v211, %v415
  %v611 = vsub.f32 %v212, %v415
  %v612 = vmul.f32 %v416, %v416
  %v613 = vmul.f32 %v417, %v417
  %v614 = vmul.f32 %v418, %v418
  %v615 = vmul.f32 %v419, %v419
  %v616 = vmul.f32 %v420, %v420
  %v617 = vmul.f32 %v421, %v421
  %v618 = vmul.f32 %v422, %v422
  %v619 = vmul.f32 %v423, %v423
  %v620 = vmul.f32 %v424, %v424
  %v621 = vmul.f32 %v425, %v425
  %v622 = vmul.f32 %v426, %v426
  %v623 = vmul.f32 %v427, %v427
  %v624 = vmul.f32 %v428, %v428
  %v625 = vmul.f32 %v429, %v429
  %v626 = vmul.f32 %v430, %v430
  %v627 = vmul.f32 %v431, %v431
  %v628 = vmul.f32 %v432, %v432
  %v629 = vmul.f32 %v433, %v433
  %v630 = vmul.f32 %v434, %v434
  %v631 = vmul.f32 %v435, %v435
  %v632 = vmul.f32 %v436, %v436
  %v633 = vmul.f32 %v437, %v437
  %v634 = vmul.f32 %v438, %v438
  %v635 = vmul.f32 %v439, %v439
  %v636 = vmul.f32 %v440, %v440
  %v637 = vmul.f32 %v441, %v441
  %v638 = vmul.f32 %v442, %v442
  %v639 = vmul.f32 %v443, %v443
  %v640 = vmul.f32 %v444, %v444
  %v641 = vmul.f32 %v445, %v445
  %v642 = vmul.f32 %v446, %v446
  %v643 = vmul.f32 %v447, %v447
  %v644 = vmul.f32 %v448, %v448
  %v645 = vmul.f32 %v449, %v449
  %v646 = vmul.f32 %v450, %v450
  %v647 = vmul.f32 %v451, %v451
  %v648 = vmul.f32 %v452, %v452
  %v649 = vmul.f32 %v453, %v453
  %v650 = vmul.f32 %v454, %v454
  %v651 = vmul.f32 %v455, %v455
  %v652 = vmul.f32 %v456, %v456
  %v653 = vmul.f32 %v457, %v457
  %v654 = vmul.f32 %v458, %v458
  %v655 = vmul.f32 %v459, %v459
  %v656 = vmul.f32 %v460, %v460
  %v657 = vmul.f32 %v461, %v461
  %v658 = vmul.f32 %v462, %v462
  %v659 = vmul.f32 %v463, %v463
  %v660 = vmul.f32 %v464, %v464
  %v661 = vmul.f32 %v465, %v465
  %v662 = vmul.f32 %v466, %v466
  %v663 = vmul.f32 %v467, %v467
  %v664 = vmul.f32 %v468, %v468
  %v665 = vmul.f32 %v469, %v469
  %v666 = vmul.f32 %v470, %v470
  %v667 = vmul.f32 %v471, %v471
  %v668 = vmul.f32 %v472, %v472
  %v669 = vmul.f32 %v473, %v473
  %v670 = vmul.f32 %v474, %v474
  %v671 = vmul.f32 %v475, %v475
  %v672 = vmul.f32 %v476, %v476
  %v673 = vmul.f32 %v477, %v477
  %v674 = vmul.f32 %v478, %v478
  %v675 = vmul.f32 %v479, %v479
  %v676 = vmul.f32 %v480, %v480
  %v677 = vmul.f32 %v481, %v481
  %v678 = vmul.f32 %v482, %v482
  %v679 = vmul.f32 %v483, %v483
  %v680 = vmul.f32 %v484, %v484
  %v681 = vmul.f32 %v485, %v485
  %v682 = vmul.f32 %v486, %v486
  %v683 = vmul.f32 %v487, %v487
  %v684 = vmul.f32 %v488, %v488
  %v685 = vmul.f32 %v489, %v489
  %v686 = vmul.f32 %v490, %v490
  %v687 = vmul.f32 %v491, %v491
  %v688 = vmul.f32 %v492, %v492
  %v689 = vmul.f32 %v493, %v493
  %v690 = vmul.f32 %v494, %v494
  %v691 = vmul.f32 %v495, %v495
  %v692 = vmul.f32 %v496, %v496
  %v693 = vmul.f32 %v497, %v497
  %v694 = vmul.f32 %v498, %v498
  %v695 = vmul.f32 %v499, %v499
  %v696 = vmul.f32 %v500, %v500
  %v697 = vmul.f32 %v501, %v501
  %v698 = vmul.f32 %v502, %v502
  %v699 = vmul.f32 %v503, %v503
  %v700 = vmul.f32 %v504, %v504
  %v701 = vmul.f32 %v505, %v505
  %v702 = vmul.f32 %v506, %v506
  %v703 = vmul.f32 %v507, %v507
  %v704 = vmul.f32 %v508, %v508
  %v705 = vmul.f32 %v509, %v509
  %v706 = vmul.f32 %v510, %v510
  %v707 = vmul.f32 %v511, %v511
  %v708 = vmul.f32 %v512, %v512
  %v709 = vmul.f32 %v513, %v513
  %v710 = vmul.f32 %v514, %v514
  %v711 = vmul.f32 %v515, %v515
  %v712 = vmul.f32 %v516, %v516
  %v713 = vmul.f32 %v517, %v517
  %v714 = vmul.f32 %v518, %v518
  %v715 = vmul.f32 %v519, %v519
  %v716 = vmul.f32 %v520, %v520
  %v717 = vmul.f32 %v521, %v521
  %v718 = vmul.f32 %v522, %v522
  %v719 = vmul.f32 %v523, %v523
  %v720 = vmul.f32 %v524, %v524
  %v721 = vmul.f32 %v525, %v525
  %v722 = vmul.f32 %v526, %v526
  %v723 = vmul.f32 %v527, %v527
  %v724 = vmul.f32 %v528, %v528
  %v725 = vmul.f32 %v529, %v529
  %v726 = vmul.f32 %v530, %v530
  %v727 = vmul.f32 %v531, %v531
  %v728 = vmul.f32 %v532, %v532
  %v729 = vmul.f32 %v533, %v533
  %v730 = vmul.f32 %v534, %v534
  %v731 = vmul.f32 %v535, %v535
  %v732 = vmul.f32 %v536, %v536
  %v733 = vmul.f32 %v537, %v537
  %v734 = vmul.f32 %v538, %v538
  %v735 = vmul.f32 %v539, %v539
  %v736 = vmul.f32 %v540, %v540
  %v737 = vmul.f32 %v541, %v541
  %v738 = vmul.f32 %v542, %v542
  %v739 = vmul.f32 %v543, %v543
  %v740 = vmul.f32 %v544, %v544
  %v741 = vmul.f32 %v545, %v545
  %v742 = vmul.f32 %v546, %v546
  %v743 = vmul.f32 %v547, %v547
  %v744 = vmul.f32 %v548, %v548
  %v745 = vmul.f32 %v549, %v549
  %v746 = vmul.f32 %v550, %v550
  %v747 = vmul.f32 %v551, %v551
  %v748 = vmul.f32 %v552, %v552
  %v749 = vmul.f32 %v553, %v553
  %v750 = vmul.f32 %v554, %v554
  %v751 = vmul.f32 %v555, %v555
  %v752 = vmul.f32 %v556, %v556
  %v753 = vmul.f32 %v557, %v557
  %v754 = vmul.f32 %v558, %v558
  %v755 = vmul.f32 %v559, %v559
  %v756 = vmul.f32 %v560, %v560
  %v757 = vmul.f32 %v561, %v561
  %v758 = vmul.f32 %v562, %v562
  %v759 = vmul.f32 %v563, %v563
  %v760 = vmul.f32 %v564, %v564
  %v761 = vmul.f32 %v565, %v565
  %v762 = vmul.f32 %v566, %v566
  %v763 = vmul.f32 %v567, %v567
  %v764 = vmul.f32 %v568, %v568
  %v765 = vmul.f32 %v569, %v569
  %v766 = vmul.f32 %v570, %v570
  %v767 = vmul.f32 %v571, %v571
  %v768 = vmul.f32 %v572, %v572
  %v769 = vmul.f32 %v573, %v573
  %v770 = vmul.f32 %v574, %v574
  %v771 = vmul.f32 %v575, %v575
  %v772 = vmul.f32 %v576, %v576
  %v773 = vmul.f32 %v577, %v577
  %v774 = vmul.f32 %v578, %v578
  %v775 = vmul.f32 %v579, %v579
  %v776 = vmul.f32 %v580, %v580
  %v777 = vmul.f32 %v581, %v581
  %v778 = vmul.f32 %v582, %v582
  %v779 = vmul.f32 %v583, %v583
  %v780 = vmul.f32 %v584, %v584
  %v781 = vmul.f32 %v585, %v585
  %v782 = vmul.f32 %v586, %v586
  %v783 = vmul.f32 %v587, %v587
  %v784 = vmul.f32 %v588, %v588
  %v785 = vmul.f32 %v589, %v589
  %v786 = vmul.f32 %v590, %v590
  %v787 = vmul.f32 %v591, %v591
  %v788 = vmul.f32 %v592, %v592
  %v789 = vmul.f32 %v593, %v593
  %v790 = vmul.f32 %v594, %v594
  %v791 = vmul.f32 %v595, %v595
  %v792 = vmul.f32 %v596, %v596
  %v793 = vmul.f32 %v597, %v597
  %v794 = vmul.f32 %v598, %v598
  %v795 = vmul.f32 %v599, %v599
  %v796 = vmul.f32 %v600, %v600
  %v797 = vmul.f32 %v601, %v601
  %v798 = vmul.f32 %v602, %v602
  %v799 = vmul.f32 %v603, %v603
  %v800 = vmul.f32 %v604, %v604
  %v801 = vmul.f32 %v605, %v605
  %v802 = vmul.f32 %v606, %v606
  %v803 = vmul.f32 %v607, %v607
  %v804 = vmul.f32 %v608, %v608
  %v805 = vmul.f32 %v609, %v609
  %v806 = vmul.f32 %v610, %v610
  %v807 = vmul.f32 %v611, %v611
  %v808 = vadd.f32 %v612, %v613
  %v809 = vadd.f32 %v808, %v614
  %v810 = vadd.f32 %v809, %v615
  %v811 = vadd.f32 %v810, %v616
  %v812 = vadd.f32 %v811, %v617
  %v813 = vadd.f32 %v812, %v618
  %v814 = vadd.f32 %v813, %v619
  %v815 = vadd.f32 %v814, %v620
  %v816 = vadd.f32 %v815, %v621
  %v817 = vadd.f32 %v816, %v622
  %v818 = vadd.f32 %v817, %v623
  %v819 = vadd.f32 %v818, %v624
  %v820 = vadd.f32 %v819, %v625
  %v821 = vadd.f32 %v820, %v626
  %v822 = vadd.f32 %v821, %v627
  %v823 = vadd.f32 %v822, %v628
  %v824 = vadd.f32 %v823, %v629
  %v825 = vadd.f32 %v824, %v630
  %v826 = vadd.f32 %v825, %v631
  %v827 = vadd.f32 %v826, %v632
  %v828 = vadd.f32 %v827, %v633
  %v829 = vadd.f32 %v828, %v634
  %v830 = vadd.f32 %v829, %v635
  %v831 = vadd.f32 %v830, %v636
  %v832 = vadd.f32 %v831, %v637
  %v833 = vadd.f32 %v832, %v638
  %v834 = vadd.f32 %v833, %v639
  %v835 = vadd.f32 %v834, %v640
  %v836 = vadd.f32 %v835, %v641
  %v837 = vadd.f32 %v836, %v642
  %v838 = vadd.f32 %v837, %v643
  %v839 = vadd.f32 %v838, %v644
  %v840 = vadd.f32 %v839, %v645
  %v841 = vadd.f32 %v840, %v646
  %v842 = vadd.f32 %v841, %v647
  %v843 = vadd.f32 %v842, %v648
  %v844 = vadd.f32 %v843, %v649
  %v845 = vadd.f32 %v844, %v650
  %v846 = vadd.f32 %v845, %v651
  %v847 = vadd.f32 %v846, %v652
  %v848 = vadd.f32 %v847, %v653
  %v849 = vadd.f32 %v848, %v654
  %v850 = vadd.f32 %v849, %v655
  %v851 = vadd.f32 %v850, %v656
  %v852 = vadd.f32 %v851, %v657
  %v853 = vadd.f32 %v852, %v658
  %v854 = vadd.f32 %v853, %v659
  %v855 = vadd.f32 %v854, %v660
  %v856 = vadd.f32 %v855, %v661
  %v857 = vadd.f32 %v856, %v662
  %v858 = vadd.f32 %v857, %v663
  %v859 = vadd.f32 %v858, %v664
  %v860 = vadd.f32 %v859, %v665
  %v861 = vadd.f32 %v860, %v666
  %v862 = vadd.f32 %v861, %v667
  %v863 = vadd.f32 %v862, %v668
  %v864 = vadd.f32 %v863, %v669
  %v865 = vadd.f32 %v864, %v670
  %v866 = vadd.f32 %v865, %v671
  %v867 = vadd.f32 %v866, %v672
  %v868 = vadd.f32 %v867, %v673
  %v869 = vadd.f32 %v868, %v674
  %v870 = vadd.f32 %v869, %v675
  %v871 = vadd.f32 %v870, %v676
  %v872 = vadd.f32 %v871, %v677
  %v873 = vadd.f32 %v872, %v678
  %v874 = vadd.f32 %v873, %v679
  %v875 = vadd.f32 %v874, %v680
  %v876 = vadd.f32 %v875, %v681
  %v877 = vadd.f32 %v876, %v682
  %v878 = vadd.f32 %v877, %v683
  %v879 = vadd.f32 %v878, %v684
  %v880 = vadd.f32 %v879, %v685
  %v881 = vadd.f32 %v880, %v686
  %v882 = vadd.f32 %v881, %v687
  %v883 = vadd.f32 %v882, %v688
  %v884 = vadd.f32 %v883, %v689
  %v885 = vadd.f32 %v884, %v690
  %v886 = vadd.f32 %v885, %v691
  %v887 = vadd.f32 %v886, %v692
  %v888 = vadd.f32 %v887, %v693
  %v889 = vadd.f32 %v888, %v694
  %v890 = vadd.f32 %v889, %v695
  %v891 = vadd.f32 %v890, %v696
  %v892 = vadd.f32 %v891, %v697
  %v893 = vadd.f32 %v892, %v698
  %v894 = vadd.f32 %v893, %v699
  %v895 = vadd.f32 %v894, %v700
  %v896 = vadd.f32 %v895, %v701
  %v897 = vadd.f32 %v896, %v702
  %v898 = vadd.f32 %v897, %v703
  %v899 = vadd.f32 %v898, %v704
  %v900 = vadd.f32 %v899, %v705
  %v901 = vadd.f32 %v900, %v706
  %v902 = vadd.f32 %v901, %v707
  %v903 = vadd.f32 %v902, %v708
  %v904 = vadd.f32 %v903, %v709
  %905 = vadd.xlane.f32.xlu0 %v904
  %v906 = vpop.xlane.xlu0 %905
  %v907 = vadd.f32 %v710, %v711
  %v908 = vadd.f32 %v907, %v712
  %v909 = vadd.f32 %v908, %v713
  %v910 = vadd.f32 %v909, %v714
  %v911 = vadd.f32 %v910, %v715
  %v912 = vadd.f32 %v911, %v716
  %v913 = vadd.f32 %v912, %v717
  %v914 = vadd.f32 %v913, %v718
  %v915 = vadd.f32 %v914, %v719
  %v916 = vadd.f32 %v915, %v720
  %v917 = vadd.f32 %v916, %v721
  %v918 = vadd.f32 %v917, %v722
  %v919 = vadd.f32 %v918, %v723
  %v920 = vadd.f32 %v919, %v724
  %v921 = vadd.f32 %v920, %v725
  %v922 = vadd.f32 %v921, %v726
  %v923 = vadd.f32 %v922, %v727
  %v924 = vadd.f32 %v923, %v728
  %v925 = vadd.f32 %v924, %v729
  %v926 = vadd.f32 %v925, %v730
  %v927 = vadd.f32 %v926, %v731
  %v928 = vadd.f32 %v927, %v732
  %v929 = vadd.f32 %v928, %v733
  %v930 = vadd.f32 %v929, %v734
  %v931 = vadd.f32 %v930, %v735
  %v932 = vadd.f32 %v931, %v736
  %v933 = vadd.f32 %v932, %v737
  %v934 = vadd.f32 %v933, %v738
  %v935 = vadd.f32 %v934, %v739
  %v936 = vadd.f32 %v935, %v740
  %v937 = vadd.f32 %v936, %v741
  %v938 = vadd.f32 %v937, %v742
  %v939 = vadd.f32 %v938, %v743
  %v940 = vadd.f32 %v939, %v744
  %v941 = vadd.f32 %v940, %v745
  %v942 = vadd.f32 %v941, %v746
  %v943 = vadd.f32 %v942, %v747
  %v944 = vadd.f32 %v943, %v748
  %v945 = vadd.f32 %v944, %v749
  %v946 = vadd.f32 %v945, %v750
  %v947 = vadd.f32 %v946, %v751
  %v948 = vadd.f32 %v947, %v752
  %v949 = vadd.f32 %v948, %v753
  %v950 = vadd.f32 %v949, %v754
  %v951 = vadd.f32 %v950, %v755
  %v952 = vadd.f32 %v951, %v756
  %v953 = vadd.f32 %v952, %v757
  %v954 = vadd.f32 %v953, %v758
  %v955 = vadd.f32 %v954, %v759
  %v956 = vadd.f32 %v955, %v760
  %v957 = vadd.f32 %v956, %v761
  %v958 = vadd.f32 %v957, %v762
  %v959 = vadd.f32 %v958, %v763
  %v960 = vadd.f32 %v959, %v764
  %v961 = vadd.f32 %v960, %v765
  %v962 = vadd.f32 %v961, %v766
  %v963 = vadd.f32 %v962, %v767
  %v964 = vadd.f32 %v963, %v768
  %v965 = vadd.f32 %v964, %v769
  %v966 = vadd.f32 %v965, %v770
  %v967 = vadd.f32 %v966, %v771
  %v968 = vadd.f32 %v967, %v772
  %v969 = vadd.f32 %v968, %v773
  %v970 = vadd.f32 %v969, %v774
  %v971 = vadd.f32 %v970, %v775
  %v972 = vadd.f32 %v971, %v776
  %v973 = vadd.f32 %v972, %v777
  %v974 = vadd.f32 %v973, %v778
  %v975 = vadd.f32 %v974, %v779
  %v976 = vadd.f32 %v975, %v780
  %v977 = vadd.f32 %v976, %v781
  %v978 = vadd.f32 %v977, %v782
  %v979 = vadd.f32 %v978, %v783
  %v980 = vadd.f32 %v979, %v784
  %v981 = vadd.f32 %v980, %v785
  %v982 = vadd.f32 %v981, %v786
  %v983 = vadd.f32 %v982, %v787
  %v984 = vadd.f32 %v983, %v788
  %v985 = vadd.f32 %v984, %v789
  %v986 = vadd.f32 %v985, %v790
  %v987 = vadd.f32 %v986, %v791
  %v988 = vadd.f32 %v987, %v792
  %v989 = vadd.f32 %v988, %v793
  %v990 = vadd.f32 %v989, %v794
  %v991 = vadd.f32 %v990, %v795
  %v992 = vadd.f32 %v991, %v796
  %v993 = vadd.f32 %v992, %v797
  %v994 = vadd.f32 %v993, %v798
  %v995 = vadd.f32 %v994, %v799
  %v996 = vadd.f32 %v995, %v800
  %v997 = vadd.f32 %v996, %v801
  %v998 = vadd.f32 %v997, %v802
  %v999 = vadd.f32 %v998, %v803
  %v1000 = vadd.f32 %v999, %v804
  %v1001 = vadd.f32 %v1000, %v805
  %v1002 = vadd.f32 %v1001, %v806
  %v1003 = vadd.f32 %v1002, %v807
  %1004 = vadd.xlane.f32.xlu0 %v1003
  %v1005 = vpop.xlane.xlu0 %1004
  %v1006 = vadd.f32 %v906, 0.0
  %v1007 = vadd.f32 %v1005, 0.0
  %v1008 = vmul.f32 %v1006, %v413
  %v1009 = vmul.f32 %v1007, %v413
  %v1010 = vadd.f32 %v1008, 0.001
  %v1011 = vadd.f32 %v1009, 0.001
  %v1012 = vrsqrt.pop %v1010
  %v1013 = vrsqrt.pop %v1011
  %v1014 = vld [vmem:[%s2] sm:$0xff]
  %v1015 = vld [vmem:[%s2 + $0x8] sm:$0xff]
  %v1016 = vmul.f32 %v1014, %v1012
  %v1017 = vmul.f32 %v1015, %v1013
  %v1018 = vld [vmem:[%s3] sm:$0xff]
  %v1019 = vld [vmem:[%s3 + $0x8] sm:$0xff]
  %1021 = vset.pattern.permute.xlu0 0
  %1022 = vperm.xlu0 %1021, %v1016
  %v1023 = vpop.permute.xlu0 %1022
  %1026 = vset.pattern.permute.xlu0 0
  %1027 = vperm.xlu0 %1026, %v1017
  %v1028 = vpop.permute.xlu0 %1027
  %v1030 = vmul.f32 %v416, %v1023
  %v1031 = vmul.f32 %v417, %v1023
  %v1032 = vmul.f32 %v418, %v1023
  %v1033 = vmul.f32 %v419, %v1023
  %v1034 = vmul.f32 %v420, %v1023
  %v1035 = vmul.f32 %v421, %v1023
  %v1036 = vmul.f32 %v422, %v1023
  %v1037 = vmul.f32 %v423, %v1023
  %v1038 = vmul.f32 %v424, %v1023
  %v1039 = vmul.f32 %v425, %v1023
  %v1040 = vmul.f32 %v426, %v1023
  %v1041 = vmul.f32 %v427, %v1023
  %v1042 = vmul.f32 %v428, %v1023
  %v1043 = vmul.f32 %v429, %v1023
  %v1044 = vmul.f32 %v430, %v1023
  %v1045 = vmul.f32 %v431, %v1023
  %v1046 = vmul.f32 %v432, %v1023
  %v1047 = vmul.f32 %v433, %v1023
  %v1048 = vmul.f32 %v434, %v1023
  %v1049 = vmul.f32 %v435, %v1023
  %v1050 = vmul.f32 %v436, %v1023
  %v1051 = vmul.f32 %v437, %v1023
  %v1052 = vmul.f32 %v438, %v1023
  %v1053 = vmul.f32 %v439, %v1023
  %v1054 = vmul.f32 %v440, %v1023
  %v1055 = vmul.f32 %v441, %v1023
  %v1056 = vmul.f32 %v442, %v1023
  %v1057 = vmul.f32 %v443, %v1023
  %v1058 = vmul.f32 %v444, %v1023
  %v1059 = vmul.f32 %v445, %v1023
  %v1060 = vmul.f32 %v446, %v1023
  %v1061 = vmul.f32 %v447, %v1023
  %v1062 = vmul.f32 %v448, %v1023
  %v1063 = vmul.f32 %v449, %v1023
  %v1064 = vmul.f32 %v450, %v1023
  %v1065 = vmul.f32 %v451, %v1023
  %v1066 = vmul.f32 %v452, %v1023
  %v1067 = vmul.f32 %v453, %v1023
  %v1068 = vmul.f32 %v454, %v1023
  %v1069 = vmul.f32 %v455, %v1023
  %v1070 = vmul.f32 %v456, %v1023
  %v1071 = vmul.f32 %v457, %v1023
  %v1072 = vmul.f32 %v458, %v1023
  %v1073 = vmul.f32 %v459, %v1023
  %v1074 = vmul.f32 %v460, %v1023
  %v1075 = vmul.f32 %v461, %v1023
  %v1076 = vmul.f32 %v462, %v1023
  %v1077 = vmul.f32 %v463, %v1023
  %v1078 = vmul.f32 %v464, %v1023
  %v1079 = vmul.f32 %v465, %v1023
  %v1080 = vmul.f32 %v466, %v1023
  %v1081 = vmul.f32 %v467, %v1023
  %v1082 = vmul.f32 %v468, %v1023
  %v1083 = vmul.f32 %v469, %v1023
  %v1084 = vmul.f32 %v470, %v1023
  %v1085 = vmul.f32 %v471, %v1023
  %v1086 = vmul.f32 %v472, %v1023
  %v1087 = vmul.f32 %v473, %v1023
  %v1088 = vmul.f32 %v474, %v1023
  %v1089 = vmul.f32 %v475, %v1023
  %v1090 = vmul.f32 %v476, %v1023
  %v1091 = vmul.f32 %v477, %v1023
  %v1092 = vmul.f32 %v478, %v1023
  %v1093 = vmul.f32 %v479, %v1023
  %v1094 = vmul.f32 %v480, %v1023
  %v1095 = vmul.f32 %v481, %v1023
  %v1096 = vmul.f32 %v482, %v1023
  %v1097 = vmul.f32 %v483, %v1023
  %v1098 = vmul.f32 %v484, %v1023
  %v1099 = vmul.f32 %v485, %v1023
  %v1100 = vmul.f32 %v486, %v1023
  %v1101 = vmul.f32 %v487, %v1023
  %v1102 = vmul.f32 %v488, %v1023
  %v1103 = vmul.f32 %v489, %v1023
  %v1104 = vmul.f32 %v490, %v1023
  %v1105 = vmul.f32 %v491, %v1023
  %v1106 = vmul.f32 %v492, %v1023
  %v1107 = vmul.f32 %v493, %v1023
  %v1108 = vmul.f32 %v494, %v1023
  %v1109 = vmul.f32 %v495, %v1023
  %v1110 = vmul.f32 %v496, %v1023
  %v1111 = vmul.f32 %v497, %v1023
  %v1112 = vmul.f32 %v498, %v1023
  %v1113 = vmul.f32 %v499, %v1023
  %v1114 = vmul.f32 %v500, %v1023
  %v1115 = vmul.f32 %v501, %v1023
  %v1116 = vmul.f32 %v502, %v1023
  %v1117 = vmul.f32 %v503, %v1023
  %v1118 = vmul.f32 %v504, %v1023
  %v1119 = vmul.f32 %v505, %v1023
  %v1120 = vmul.f32 %v506, %v1023
  %v1121 = vmul.f32 %v507, %v1023
  %v1122 = vmul.f32 %v508, %v1023
  %v1123 = vmul.f32 %v509, %v1023
  %v1124 = vmul.f32 %v510, %v1023
  %v1125 = vmul.f32 %v511, %v1023
  %v1126 = vmul.f32 %v512, %v1023
  %v1127 = vmul.f32 %v513, %v1023
  %v1128 = vmul.f32 %v514, %v1028
  %v1129 = vmul.f32 %v515, %v1028
  %v1130 = vmul.f32 %v516, %v1028
  %v1131 = vmul.f32 %v517, %v1028
  %v1132 = vmul.f32 %v518, %v1028
  %v1133 = vmul.f32 %v519, %v1028
  %v1134 = vmul.f32 %v520, %v1028
  %v1135 = vmul.f32 %v521, %v1028
  %v1136 = vmul.f32 %v522, %v1028
  %v1137 = vmul.f32 %v523, %v1028
  %v1138 = vmul.f32 %v524, %v1028
  %v1139 = vmul.f32 %v525, %v1028
  %v1140 = vmul.f32 %v526, %v1028
  %v1141 = vmul.f32 %v527, %v1028
  %v1142 = vmul.f32 %v528, %v1028
  %v1143 = vmul.f32 %v529, %v1028
  %v1144 = vmul.f32 %v530, %v1028
  %v1145 = vmul.f32 %v531, %v1028
  %v1146 = vmul.f32 %v532, %v1028
  %v1147 = vmul.f32 %v533, %v1028
  %v1148 = vmul.f32 %v534, %v1028
  %v1149 = vmul.f32 %v535, %v1028
  %v1150 = vmul.f32 %v536, %v1028
  %v1151 = vmul.f32 %v537, %v1028
  %v1152 = vmul.f32 %v538, %v1028
  %v1153 = vmul.f32 %v539, %v1028
  %v1154 = vmul.f32 %v540, %v1028
  %v1155 = vmul.f32 %v541, %v1028
  %v1156 = vmul.f32 %v542, %v1028
  %v1157 = vmul.f32 %v543, %v1028
  %v1158 = vmul.f32 %v544, %v1028
  %v1159 = vmul.f32 %v545, %v1028
  %v1160 = vmul.f32 %v546, %v1028
  %v1161 = vmul.f32 %v547, %v1028
  %v1162 = vmul.f32 %v548, %v1028
  %v1163 = vmul.f32 %v549, %v1028
  %v1164 = vmul.f32 %v550, %v1028
  %v1165 = vmul.f32 %v551, %v1028
  %v1166 = vmul.f32 %v552, %v1028
  %v1167 = vmul.f32 %v553, %v1028
  %v1168 = vmul.f32 %v554, %v1028
  %v1169 = vmul.f32 %v555, %v1028
  %v1170 = vmul.f32 %v556, %v1028
  %v1171 = vmul.f32 %v557, %v1028
  %v1172 = vmul.f32 %v558, %v1028
  %v1173 = vmul.f32 %v559, %v1028
  %v1174 = vmul.f32 %v560, %v1028
  %v1175 = vmul.f32 %v561, %v1028
  %v1176 = vmul.f32 %v562, %v1028
  %v1177 = vmul.f32 %v563, %v1028
  %v1178 = vmul.f32 %v564, %v1028
  %v1179 = vmul.f32 %v565, %v1028
  %v1180 = vmul.f32 %v566, %v1028
  %v1181 = vmul.f32 %v567, %v1028
  %v1182 = vmul.f32 %v568, %v1028
  %v1183 = vmul.f32 %v569, %v1028
  %v1184 = vmul.f32 %v570, %v1028
  %v1185 = vmul.f32 %v571, %v1028
  %v1186 = vmul.f32 %v572, %v1028
  %v1187 = vmul.f32 %v573, %v1028
  %v1188 = vmul.f32 %v574, %v1028
  %v1189 = vmul.f32 %v575, %v1028
  %v1190 = vmul.f32 %v576, %v1028
  %v1191 = vmul.f32 %v577, %v1028
  %v1192 = vmul.f32 %v578, %v1028
  %v1193 = vmul.f32 %v579, %v1028
  %v1194 = vmul.f32 %v580, %v1028
  %v1195 = vmul.f32 %v581, %v1028
  %v1196 = vmul.f32 %v582, %v1028
  %v1197 = vmul.f32 %v583, %v1028
  %v1198 = vmul.f32 %v584, %v1028
  %v1199 = vmul.f32 %v585, %v1028
  %v1200 = vmul.f32 %v586, %v1028
  %v1201 = vmul.f32 %v587, %v1028
  %v1202 = vmul.f32 %v588, %v1028
  %v1203 = vmul.f32 %v589, %v1028
  %v1204 = vmul.f32 %v590, %v1028
  %v1205 = vmul.f32 %v591, %v1028
  %v1206 = vmul.f32 %v592, %v1028
  %v1207 = vmul.f32 %v593, %v1028
  %v1208 = vmul.f32 %v594, %v1028
  %v1209 = vmul.f32 %v595, %v1028
  %v1210 = vmul.f32 %v596, %v1028
  %v1211 = vmul.f32 %v597, %v1028
  %v1212 = vmul.f32 %v598, %v1028
  %v1213 = vmul.f32 %v599, %v1028
  %v1214 = vmul.f32 %v600, %v1028
  %v1215 = vmul.f32 %v601, %v1028
  %v1216 = vmul.f32 %v602, %v1028
  %v1217 = vmul.f32 %v603, %v1028
  %v1218 = vmul.f32 %v604, %v1028
  %v1219 = vmul.f32 %v605, %v1028
  %v1220 = vmul.f32 %v606, %v1028
  %v1221 = vmul.f32 %v607, %v1028
  %v1222 = vmul.f32 %v608, %v1028
  %v1223 = vmul.f32 %v609, %v1028
  %v1224 = vmul.f32 %v610, %v1028
  %v1225 = vmul.f32 %v611, %v1028
  %1227 = vset.pattern.permute.xlu0 0
  %1228 = vperm.xlu0 %1227, %v1018
  %v1229 = vpop.permute.xlu0 %1228
  %1232 = vset.pattern.permute.xlu0 0
  %1233 = vperm.xlu0 %1232, %v1019
  %v1234 = vpop.permute.xlu0 %1233
  %v1236 = vadd.f32 %v1030, %v1229
  %v1237 = vadd.f32 %v1031, %v1229
  %v1238 = vadd.f32 %v1032, %v1229
  %v1239 = vadd.f32 %v1033, %v1229
  %v1240 = vadd.f32 %v1034, %v1229
  %v1241 = vadd.f32 %v1035, %v1229
  %v1242 = vadd.f32 %v1036, %v1229
  %v1243 = vadd.f32 %v1037, %v1229
  %v1244 = vadd.f32 %v1038, %v1229
  %v1245 = vadd.f32 %v1039, %v1229
  %v1246 = vadd.f32 %v1040, %v1229
  %v1247 = vadd.f32 %v1041, %v1229
  %v1248 = vadd.f32 %v1042, %v1229
  %v1249 = vadd.f32 %v1043, %v1229
  %v1250 = vadd.f32 %v1044, %v1229
  %v1251 = vadd.f32 %v1045, %v1229
  %v1252 = vadd.f32 %v1046, %v1229
  %v1253 = vadd.f32 %v1047, %v1229
  %v1254 = vadd.f32 %v1048, %v1229
  %v1255 = vadd.f32 %v1049, %v1229
  %v1256 = vadd.f32 %v1050, %v1229
  %v1257 = vadd.f32 %v1051, %v1229
  %v1258 = vadd.f32 %v1052, %v1229
  %v1259 = vadd.f32 %v1053, %v1229
  %v1260 = vadd.f32 %v1054, %v1229
  %v1261 = vadd.f32 %v1055, %v1229
  %v1262 = vadd.f32 %v1056, %v1229
  %v1263 = vadd.f32 %v1057, %v1229
  %v1264 = vadd.f32 %v1058, %v1229
  %v1265 = vadd.f32 %v1059, %v1229
  %v1266 = vadd.f32 %v1060, %v1229
  %v1267 = vadd.f32 %v1061, %v1229
  %v1268 = vadd.f32 %v1062, %v1229
  %v1269 = vadd.f32 %v1063, %v1229
  %v1270 = vadd.f32 %v1064, %v1229
  %v1271 = vadd.f32 %v1065, %v1229
  %v1272 = vadd.f32 %v1066, %v1229
  %v1273 = vadd.f32 %v1067, %v1229
  %v1274 = vadd.f32 %v1068, %v1229
  %v1275 = vadd.f32 %v1069, %v1229
  %v1276 = vadd.f32 %v1070, %v1229
  %v1277 = vadd.f32 %v1071, %v1229
  %v1278 = vadd.f32 %v1072, %v1229
  %v1279 = vadd.f32 %v1073, %v1229
  %v1280 = vadd.f32 %v1074, %v1229
  %v1281 = vadd.f32 %v1075, %v1229
  %v1282 = vadd.f32 %v1076, %v1229
  %v1283 = vadd.f32 %v1077, %v1229
  %v1284 = vadd.f32 %v1078, %v1229
  %v1285 = vadd.f32 %v1079, %v1229
  %v1286 = vadd.f32 %v1080, %v1229
  %v1287 = vadd.f32 %v1081, %v1229
  %v1288 = vadd.f32 %v1082, %v1229
  %v1289 = vadd.f32 %v1083, %v1229
  %v1290 = vadd.f32 %v1084, %v1229
  %v1291 = vadd.f32 %v1085, %v1229
  %v1292 = vadd.f32 %v1086, %v1229
  %v1293 = vadd.f32 %v1087, %v1229
  %v1294 = vadd.f32 %v1088, %v1229
  %v1295 = vadd.f32 %v1089, %v1229
  %v1296 = vadd.f32 %v1090, %v1229
  %v1297 = vadd.f32 %v1091, %v1229
  %v1298 = vadd.f32 %v1092, %v1229
  %v1299 = vadd.f32 %v1093, %v1229
  %v1300 = vadd.f32 %v1094, %v1229
  %v1301 = vadd.f32 %v1095, %v1229
  %v1302 = vadd.f32 %v1096, %v1229
  %v1303 = vadd.f32 %v1097, %v1229
  %v1304 = vadd.f32 %v1098, %v1229
  %v1305 = vadd.f32 %v1099, %v1229
  %v1306 = vadd.f32 %v1100, %v1229
  %v1307 = vadd.f32 %v1101, %v1229
  %v1308 = vadd.f32 %v1102, %v1229
  %v1309 = vadd.f32 %v1103, %v1229
  %v1310 = vadd.f32 %v1104, %v1229
  %v1311 = vadd.f32 %v1105, %v1229
  %v1312 = vadd.f32 %v1106, %v1229
  %v1313 = vadd.f32 %v1107, %v1229
  %v1314 = vadd.f32 %v1108, %v1229
  %v1315 = vadd.f32 %v1109, %v1229
  %v1316 = vadd.f32 %v1110, %v1229
  %v1317 = vadd.f32 %v1111, %v1229
  %v1318 = vadd.f32 %v1112, %v1229
  %v1319 = vadd.f32 %v1113, %v1229
  %v1320 = vadd.f32 %v1114, %v1229
  %v1321 = vadd.f32 %v1115, %v1229
  %v1322 = vadd.f32 %v1116, %v1229
  %v1323 = vadd.f32 %v1117, %v1229
  %v1324 = vadd.f32 %v1118, %v1229
  %v1325 = vadd.f32 %v1119, %v1229
  %v1326 = vadd.f32 %v1120, %v1229
  %v1327 = vadd.f32 %v1121, %v1229
  %v1328 = vadd.f32 %v1122, %v1229
  %v1329 = vadd.f32 %v1123, %v1229
  %v1330 = vadd.f32 %v1124, %v1229
  %v1331 = vadd.f32 %v1125, %v1229
  %v1332 = vadd.f32 %v1126, %v1229
  %v1333 = vadd.f32 %v1127, %v1229
  %v1334 = vadd.f32 %v1128, %v1234
  %v1335 = vadd.f32 %v1129, %v1234
  %v1336 = vadd.f32 %v1130, %v1234
  %v1337 = vadd.f32 %v1131, %v1234
  %v1338 = vadd.f32 %v1132, %v1234
  %v1339 = vadd.f32 %v1133, %v1234
  %v1340 = vadd.f32 %v1134, %v1234
  %v1341 = vadd.f32 %v1135, %v1234
  %v1342 = vadd.f32 %v1136, %v1234
  %v1343 = vadd.f32 %v1137, %v1234
  %v1344 = vadd.f32 %v1138, %v1234
  %v1345 = vadd.f32 %v1139, %v1234
  %v1346 = vadd.f32 %v1140, %v1234
  %v1347 = vadd.f32 %v1141, %v1234
  %v1348 = vadd.f32 %v1142, %v1234
  %v1349 = vadd.f32 %v1143, %v1234
  %v1350 = vadd.f32 %v1144, %v1234
  %v1351 = vadd.f32 %v1145, %v1234
  %v1352 = vadd.f32 %v1146, %v1234
  %v1353 = vadd.f32 %v1147, %v1234
  %v1354 = vadd.f32 %v1148, %v1234
  %v1355 = vadd.f32 %v1149, %v1234
  %v1356 = vadd.f32 %v1150, %v1234
  %v1357 = vadd.f32 %v1151, %v1234
  %v1358 = vadd.f32 %v1152, %v1234
  %v1359 = vadd.f32 %v1153, %v1234
  %v1360 = vadd.f32 %v1154, %v1234
  %v1361 = vadd.f32 %v1155, %v1234
  %v1362 = vadd.f32 %v1156, %v1234
  %v1363 = vadd.f32 %v1157, %v1234
  %v1364 = vadd.f32 %v1158, %v1234
  %v1365 = vadd.f32 %v1159, %v1234
  %v1366 = vadd.f32 %v1160, %v1234
  %v1367 = vadd.f32 %v1161, %v1234
  %v1368 = vadd.f32 %v1162, %v1234
  %v1369 = vadd.f32 %v1163, %v1234
  %v1370 = vadd.f32 %v1164, %v1234
  %v1371 = vadd.f32 %v1165, %v1234
  %v1372 = vadd.f32 %v1166, %v1234
  %v1373 = vadd.f32 %v1167, %v1234
  %v1374 = vadd.f32 %v1168, %v1234
  %v1375 = vadd.f32 %v1169, %v1234
  %v1376 = vadd.f32 %v1170, %v1234
  %v1377 = vadd.f32 %v1171, %v1234
  %v1378 = vadd.f32 %v1172, %v1234
  %v1379 = vadd.f32 %v1173, %v1234
  %v1380 = vadd.f32 %v1174, %v1234
  %v1381 = vadd.f32 %v1175, %v1234
  %v1382 = vadd.f32 %v1176, %v1234
  %v1383 = vadd.f32 %v1177, %v1234
  %v1384 = vadd.f32 %v1178, %v1234
  %v1385 = vadd.f32 %v1179, %v1234
  %v1386 = vadd.f32 %v1180, %v1234
  %v1387 = vadd.f32 %v1181, %v1234
  %v1388 = vadd.f32 %v1182, %v1234
  %v1389 = vadd.f32 %v1183, %v1234
  %v1390 = vadd.f32 %v1184, %v1234
  %v1391 = vadd.f32 %v1185, %v1234
  %v1392 = vadd.f32 %v1186, %v1234
  %v1393 = vadd.f32 %v1187, %v1234
  %v1394 = vadd.f32 %v1188, %v1234
  %v1395 = vadd.f32 %v1189, %v1234
  %v1396 = vadd.f32 %v1190, %v1234
  %v1397 = vadd.f32 %v1191, %v1234
  %v1398 = vadd.f32 %v1192, %v1234
  %v1399 = vadd.f32 %v1193, %v1234
  %v1400 = vadd.f32 %v1194, %v1234
  %v1401 = vadd.f32 %v1195, %v1234
  %v1402 = vadd.f32 %v1196, %v1234
  %v1403 = vadd.f32 %v1197, %v1234
  %v1404 = vadd.f32 %v1198, %v1234
  %v1405 = vadd.f32 %v1199, %v1234
  %v1406 = vadd.f32 %v1200, %v1234
  %v1407 = vadd.f32 %v1201, %v1234
  %v1408 = vadd.f32 %v1202, %v1234
  %v1409 = vadd.f32 %v1203, %v1234
  %v1410 = vadd.f32 %v1204, %v1234
  %v1411 = vadd.f32 %v1205, %v1234
  %v1412 = vadd.f32 %v1206, %v1234
  %v1413 = vadd.f32 %v1207, %v1234
  %v1414 = vadd.f32 %v1208, %v1234
  %v1415 = vadd.f32 %v1209, %v1234
  %v1416 = vadd.f32 %v1210, %v1234
  %v1417 = vadd.f32 %v1211, %v1234
  %v1418 = vadd.f32 %v1212, %v1234
  %v1419 = vadd.f32 %v1213, %v1234
  %v1420 = vadd.f32 %v1214, %v1234
  %v1421 = vadd.f32 %v1215, %v1234
  %v1422 = vadd.f32 %v1216, %v1234
  %v1423 = vadd.f32 %v1217, %v1234
  %v1424 = vadd.f32 %v1218, %v1234
  %v1425 = vadd.f32 %v1219, %v1234
  %v1426 = vadd.f32 %v1220, %v1234
  %v1427 = vadd.f32 %v1221, %v1234
  %v1428 = vadd.f32 %v1222, %v1234
  %v1429 = vadd.f32 %v1223, %v1234
  %v1430 = vadd.f32 %v1224, %v1234
  %v1431 = vadd.f32 %v1225, %v1234
  %v1432 = vld [vmem:[%s1] sm:$0xff]
  %v1433 = vld [vmem:[%s1 + $0x8] sm:$0xff]
  %v1434 = vld [vmem:[%s1 + $0x10] sm:$0xff]
  %v1435 = vld [vmem:[%s1 + $0x18] sm:$0xff]
  %v1436 = vld [vmem:[%s1 + $0x20] sm:$0xff]
  %v1437 = vld [vmem:[%s1 + $0x28] sm:$0xff]
  %v1438 = vld [vmem:[%s1 + $0x30] sm:$0xff]
  %v1439 = vld [vmem:[%s1 + $0x38] sm:$0xff]
  %v1440 = vld [vmem:[%s1 + $0x40] sm:$0xff]
  %v1441 = vld [vmem:[%s1 + $0x48] sm:$0xff]
  %v1442 = vld [vmem:[%s1 + $0x50] sm:$0xff]
  %v1443 = vld [vmem:[%s1 + $0x58] sm:$0xff]
  %v1444 = vld [vmem:[%s1 + $0x60] sm:$0xff]
  %v1445 = vld [vmem:[%s1 + $0x68] sm:$0xff]
  %v1446 = vld [vmem:[%s1 + $0x70] sm:$0xff]
  %v1447 = vld [vmem:[%s1 + $0x78] sm:$0xff]
  %v1448 = vld [vmem:[%s1 + $0x80] sm:$0xff]
  %v1449 = vld [vmem:[%s1 + $0x88] sm:$0xff]
  %v1450 = vld [vmem:[%s1 + $0x90] sm:$0xff]
  %v1451 = vld [vmem:[%s1 + $0x98] sm:$0xff]
  %v1452 = vld [vmem:[%s1 + $0xa0] sm:$0xff]
  %v1453 = vld [vmem:[%s1 + $0xa8] sm:$0xff]
  %v1454 = vld [vmem:[%s1 + $0xb0] sm:$0xff]
  %v1455 = vld [vmem:[%s1 + $0xb8] sm:$0xff]
  %v1456 = vld [vmem:[%s1 + $0xc0] sm:$0xff]
  %v1457 = vld [vmem:[%s1 + $0xc8] sm:$0xff]
  %v1458 = vld [vmem:[%s1 + $0xd0] sm:$0xff]
  %v1459 = vld [vmem:[%s1 + $0xd8] sm:$0xff]
  %v1460 = vld [vmem:[%s1 + $0xe0] sm:$0xff]
  %v1461 = vld [vmem:[%s1 + $0xe8] sm:$0xff]
  %v1462 = vld [vmem:[%s1 + $0xf0] sm:$0xff]
  %v1463 = vld [vmem:[%s1 + $0xf8] sm:$0xff]
  %v1464 = vld [vmem:[%s1 + $0x100] sm:$0xff]
  %v1465 = vld [vmem:[%s1 + $0x108] sm:$0xff]
  %v1466 = vld [vmem:[%s1 + $0x110] sm:$0xff]
  %v1467 = vld [vmem:[%s1 + $0x118] sm:$0xff]
  %v1468 = vld [vmem:[%s1 + $0x120] sm:$0xff]
  %v1469 = vld [vmem:[%s1 + $0x128] sm:$0xff]
  %v1470 = vld [vmem:[%s1 + $0x130] sm:$0xff]
  %v1471 = vld [vmem:[%s1 + $0x138] sm:$0xff]
  %v1472 = vld [vmem:[%s1 + $0x140] sm:$0xff]
  %v1473 = vld [vmem:[%s1 + $0x148] sm:$0xff]
  %v1474 = vld [vmem:[%s1 + $0x150] sm:$0xff]
  %v1475 = vld [vmem:[%s1 + $0x158] sm:$0xff]
  %v1476 = vld [vmem:[%s1 + $0x160] sm:$0xff]
  %v1477 = vld [vmem:[%s1 + $0x168] sm:$0xff]
  %v1478 = vld [vmem:[%s1 + $0x170] sm:$0xff]
  %v1479 = vld [vmem:[%s1 + $0x178] sm:$0xff]
  %v1480 = vld [vmem:[%s1 + $0x180] sm:$0xff]
  %v1481 = vld [vmem:[%s1 + $0x188] sm:$0xff]
  %v1482 = vld [vmem:[%s1 + $0x190] sm:$0xff]
  %v1483 = vld [vmem:[%s1 + $0x198] sm:$0xff]
  %v1484 = vld [vmem:[%s1 + $0x1a0] sm:$0xff]
  %v1485 = vld [vmem:[%s1 + $0x1a8] sm:$0xff]
  %v1486 = vld [vmem:[%s1 + $0x1b0] sm:$0xff]
  %v1487 = vld [vmem:[%s1 + $0x1b8] sm:$0xff]
  %v1488 = vld [vmem:[%s1 + $0x1c0] sm:$0xff]
  %v1489 = vld [vmem:[%s1 + $0x1c8] sm:$0xff]
  %v1490 = vld [vmem:[%s1 + $0x1d0] sm:$0xff]
  %v1491 = vld [vmem:[%s1 + $0x1d8] sm:$0xff]
  %v1492 = vld [vmem:[%s1 + $0x1e0] sm:$0xff]
  %v1493 = vld [vmem:[%s1 + $0x1e8] sm:$0xff]
  %v1494 = vld [vmem:[%s1 + $0x1f0] sm:$0xff]
  %v1495 = vld [vmem:[%s1 + $0x1f8] sm:$0xff]
  %v1496 = vld [vmem:[%s1 + $0x200] sm:$0xff]
  %v1497 = vld [vmem:[%s1 + $0x208] sm:$0xff]
  %v1498 = vld [vmem:[%s1 + $0x210] sm:$0xff]
  %v1499 = vld [vmem:[%s1 + $0x218] sm:$0xff]
  %v1500 = vld [vmem:[%s1 + $0x220] sm:$0xff]
  %v1501 = vld [vmem:[%s1 + $0x228] sm:$0xff]
  %v1502 = vld [vmem:[%s1 + $0x230] sm:$0xff]
  %v1503 = vld [vmem:[%s1 + $0x238] sm:$0xff]
  %v1504 = vld [vmem:[%s1 + $0x240] sm:$0xff]
  %v1505 = vld [vmem:[%s1 + $0x248] sm:$0xff]
  %v1506 = vld [vmem:[%s1 + $0x250] sm:$0xff]
  %v1507 = vld [vmem:[%s1 + $0x258] sm:$0xff]
  %v1508 = vld [vmem:[%s1 + $0x260] sm:$0xff]
  %v1509 = vld [vmem:[%s1 + $0x268] sm:$0xff]
  %v1510 = vld [vmem:[%s1 + $0x270] sm:$0xff]
  %v1511 = vld [vmem:[%s1 + $0x278] sm:$0xff]
  %v1512 = vld [vmem:[%s1 + $0x280] sm:$0xff]
  %v1513 = vld [vmem:[%s1 + $0x288] sm:$0xff]
  %v1514 = vld [vmem:[%s1 + $0x290] sm:$0xff]
  %v1515 = vld [vmem:[%s1 + $0x298] sm:$0xff]
  %v1516 = vld [vmem:[%s1 + $0x2a0] sm:$0xff]
  %v1517 = vld [vmem:[%s1 + $0x2a8] sm:$0xff]
  %v1518 = vld [vmem:[%s1 + $0x2b0] sm:$0xff]
  %v1519 = vld [vmem:[%s1 + $0x2b8] sm:$0xff]
  %v1520 = vld [vmem:[%s1 + $0x2c0] sm:$0xff]
  %v1521 = vld [vmem:[%s1 + $0x2c8] sm:$0xff]
  %v1522 = vld [vmem:[%s1 + $0x2d0] sm:$0xff]
  %v1523 = vld [vmem:[%s1 + $0x2d8] sm:$0xff]
  %v1524 = vld [vmem:[%s1 + $0x2e0] sm:$0xff]
  %v1525 = vld [vmem:[%s1 + $0x2e8] sm:$0xff]
  %v1526 = vld [vmem:[%s1 + $0x2f0] sm:$0xff]
  %v1527 = vld [vmem:[%s1 + $0x2f8] sm:$0xff]
  %v1528 = vld [vmem:[%s1 + $0x300] sm:$0xff]
  %v1529 = vld [vmem:[%s1 + $0x308] sm:$0xff]
  %v1530 = vld [vmem:[%s1 + $0x310] sm:$0xff]
  %v1531 = vld [vmem:[%s1 + $0x318] sm:$0xff]
  %v1532 = vld [vmem:[%s1 + $0x320] sm:$0xff]
  %v1533 = vld [vmem:[%s1 + $0x328] sm:$0xff]
  %v1534 = vld [vmem:[%s1 + $0x330] sm:$0xff]
  %v1535 = vld [vmem:[%s1 + $0x338] sm:$0xff]
  %v1536 = vld [vmem:[%s1 + $0x340] sm:$0xff]
  %v1537 = vld [vmem:[%s1 + $0x348] sm:$0xff]
  %v1538 = vld [vmem:[%s1 + $0x350] sm:$0xff]
  %v1539 = vld [vmem:[%s1 + $0x358] sm:$0xff]
  %v1540 = vld [vmem:[%s1 + $0x360] sm:$0xff]
  %v1541 = vld [vmem:[%s1 + $0x368] sm:$0xff]
  %v1542 = vld [vmem:[%s1 + $0x370] sm:$0xff]
  %v1543 = vld [vmem:[%s1 + $0x378] sm:$0xff]
  %v1544 = vld [vmem:[%s1 + $0x380] sm:$0xff]
  %v1545 = vld [vmem:[%s1 + $0x388] sm:$0xff]
  %v1546 = vld [vmem:[%s1 + $0x390] sm:$0xff]
  %v1547 = vld [vmem:[%s1 + $0x398] sm:$0xff]
  %v1548 = vld [vmem:[%s1 + $0x3a0] sm:$0xff]
  %v1549 = vld [vmem:[%s1 + $0x3a8] sm:$0xff]
  %v1550 = vld [vmem:[%s1 + $0x3b0] sm:$0xff]
  %v1551 = vld [vmem:[%s1 + $0x3b8] sm:$0xff]
  %v1552 = vld [vmem:[%s1 + $0x3c0] sm:$0xff]
  %v1553 = vld [vmem:[%s1 + $0x3c8] sm:$0xff]
  %v1554 = vld [vmem:[%s1 + $0x3d0] sm:$0xff]
  %v1555 = vld [vmem:[%s1 + $0x3d8] sm:$0xff]
  %v1556 = vld [vmem:[%s1 + $0x3e0] sm:$0xff]
  %v1557 = vld [vmem:[%s1 + $0x3e8] sm:$0xff]
  %v1558 = vld [vmem:[%s1 + $0x3f0] sm:$0xff]
  %v1559 = vld [vmem:[%s1 + $0x3f8] sm:$0xff]
  %v1560 = vld [vmem:[%s1 + $0x400] sm:$0xff]
  %v1561 = vld [vmem:[%s1 + $0x408] sm:$0xff]
  %v1562 = vld [vmem:[%s1 + $0x410] sm:$0xff]
  %v1563 = vld [vmem:[%s1 + $0x418] sm:$0xff]
  %v1564 = vld [vmem:[%s1 + $0x420] sm:$0xff]
  %v1565 = vld [vmem:[%s1 + $0x428] sm:$0xff]
  %v1566 = vld [vmem:[%s1 + $0x430] sm:$0xff]
  %v1567 = vld [vmem:[%s1 + $0x438] sm:$0xff]
  %v1568 = vld [vmem:[%s1 + $0x440] sm:$0xff]
  %v1569 = vld [vmem:[%s1 + $0x448] sm:$0xff]
  %v1570 = vld [vmem:[%s1 + $0x450] sm:$0xff]
  %v1571 = vld [vmem:[%s1 + $0x458] sm:$0xff]
  %v1572 = vld [vmem:[%s1 + $0x460] sm:$0xff]
  %v1573 = vld [vmem:[%s1 + $0x468] sm:$0xff]
  %v1574 = vld [vmem:[%s1 + $0x470] sm:$0xff]
  %v1575 = vld [vmem:[%s1 + $0x478] sm:$0xff]
  %v1576 = vld [vmem:[%s1 + $0x480] sm:$0xff]
  %v1577 = vld [vmem:[%s1 + $0x488] sm:$0xff]
  %v1578 = vld [vmem:[%s1 + $0x490] sm:$0xff]
  %v1579 = vld [vmem:[%s1 + $0x498] sm:$0xff]
  %v1580 = vld [vmem:[%s1 + $0x4a0] sm:$0xff]
  %v1581 = vld [vmem:[%s1 + $0x4a8] sm:$0xff]
  %v1582 = vld [vmem:[%s1 + $0x4b0] sm:$0xff]
  %v1583 = vld [vmem:[%s1 + $0x4b8] sm:$0xff]
  %v1584 = vld [vmem:[%s1 + $0x4c0] sm:$0xff]
  %v1585 = vld [vmem:[%s1 + $0x4c8] sm:$0xff]
  %v1586 = vld [vmem:[%s1 + $0x4d0] sm:$0xff]
  %v1587 = vld [vmem:[%s1 + $0x4d8] sm:$0xff]
  %v1588 = vld [vmem:[%s1 + $0x4e0] sm:$0xff]
  %v1589 = vld [vmem:[%s1 + $0x4e8] sm:$0xff]
  %v1590 = vld [vmem:[%s1 + $0x4f0] sm:$0xff]
  %v1591 = vld [vmem:[%s1 + $0x4f8] sm:$0xff]
  %v1592 = vld [vmem:[%s1 + $0x500] sm:$0xff]
  %v1593 = vld [vmem:[%s1 + $0x508] sm:$0xff]
  %v1594 = vld [vmem:[%s1 + $0x510] sm:$0xff]
  %v1595 = vld [vmem:[%s1 + $0x518] sm:$0xff]
  %v1596 = vld [vmem:[%s1 + $0x520] sm:$0xff]
  %v1597 = vld [vmem:[%s1 + $0x528] sm:$0xff]
  %v1598 = vld [vmem:[%s1 + $0x530] sm:$0xff]
  %v1599 = vld [vmem:[%s1 + $0x538] sm:$0xff]
  %v1600 = vld [vmem:[%s1 + $0x540] sm:$0xff]
  %v1601 = vld [vmem:[%s1 + $0x548] sm:$0xff]
  %v1602 = vld [vmem:[%s1 + $0x550] sm:$0xff]
  %v1603 = vld [vmem:[%s1 + $0x558] sm:$0xff]
  %v1604 = vld [vmem:[%s1 + $0x560] sm:$0xff]
  %v1605 = vld [vmem:[%s1 + $0x568] sm:$0xff]
  %v1606 = vld [vmem:[%s1 + $0x570] sm:$0xff]
  %v1607 = vld [vmem:[%s1 + $0x578] sm:$0xff]
  %v1608 = vld [vmem:[%s1 + $0x580] sm:$0xff]
  %v1609 = vld [vmem:[%s1 + $0x588] sm:$0xff]
  %v1610 = vld [vmem:[%s1 + $0x590] sm:$0xff]
  %v1611 = vld [vmem:[%s1 + $0x598] sm:$0xff]
  %v1612 = vld [vmem:[%s1 + $0x5a0] sm:$0xff]
  %v1613 = vld [vmem:[%s1 + $0x5a8] sm:$0xff]
  %v1614 = vld [vmem:[%s1 + $0x5b0] sm:$0xff]
  %v1615 = vld [vmem:[%s1 + $0x5b8] sm:$0xff]
  %v1616 = vld [vmem:[%s1 + $0x5c0] sm:$0xff]
  %v1617 = vld [vmem:[%s1 + $0x5c8] sm:$0xff]
  %v1618 = vld [vmem:[%s1 + $0x5d0] sm:$0xff]
  %v1619 = vld [vmem:[%s1 + $0x5d8] sm:$0xff]
  %v1620 = vld [vmem:[%s1 + $0x5e0] sm:$0xff]
  %v1621 = vld [vmem:[%s1 + $0x5e8] sm:$0xff]
  %v1622 = vld [vmem:[%s1 + $0x5f0] sm:$0xff]
  %v1623 = vld [vmem:[%s1 + $0x5f8] sm:$0xff]
  %v1624 = vld [vmem:[%s1 + $0x600] sm:$0xff]
  %v1625 = vld [vmem:[%s1 + $0x608] sm:$0xff]
  %v1626 = vld [vmem:[%s1 + $0x610] sm:$0xff]
  %v1627 = vld [vmem:[%s1 + $0x618] sm:$0xff]
  %v1628 = vadd.f32 %v1236, %v1432
  %v1629 = vadd.f32 %v1237, %v1433
  %v1630 = vadd.f32 %v1238, %v1434
  %v1631 = vadd.f32 %v1239, %v1435
  %v1632 = vadd.f32 %v1240, %v1436
  %v1633 = vadd.f32 %v1241, %v1437
  %v1634 = vadd.f32 %v1242, %v1438
  %v1635 = vadd.f32 %v1243, %v1439
  %v1636 = vadd.f32 %v1244, %v1440
  %v1637 = vadd.f32 %v1245, %v1441
  %v1638 = vadd.f32 %v1246, %v1442
  %v1639 = vadd.f32 %v1247, %v1443
  %v1640 = vadd.f32 %v1248, %v1444
  %v1641 = vadd.f32 %v1249, %v1445
  %v1642 = vadd.f32 %v1250, %v1446
  %v1643 = vadd.f32 %v1251, %v1447
  %v1644 = vadd.f32 %v1252, %v1448
  %v1645 = vadd.f32 %v1253, %v1449
  %v1646 = vadd.f32 %v1254, %v1450
  %v1647 = vadd.f32 %v1255, %v1451
  %v1648 = vadd.f32 %v1256, %v1452
  %v1649 = vadd.f32 %v1257, %v1453
  %v1650 = vadd.f32 %v1258, %v1454
  %v1651 = vadd.f32 %v1259, %v1455
  %v1652 = vadd.f32 %v1260, %v1456
  %v1653 = vadd.f32 %v1261, %v1457
  %v1654 = vadd.f32 %v1262, %v1458
  %v1655 = vadd.f32 %v1263, %v1459
  %v1656 = vadd.f32 %v1264, %v1460
  %v1657 = vadd.f32 %v1265, %v1461
  %v1658 = vadd.f32 %v1266, %v1462
  %v1659 = vadd.f32 %v1267, %v1463
  %v1660 = vadd.f32 %v1268, %v1464
  %v1661 = vadd.f32 %v1269, %v1465
  %v1662 = vadd.f32 %v1270, %v1466
  %v1663 = vadd.f32 %v1271, %v1467
  %v1664 = vadd.f32 %v1272, %v1468
  %v1665 = vadd.f32 %v1273, %v1469
  %v1666 = vadd.f32 %v1274, %v1470
  %v1667 = vadd.f32 %v1275, %v1471
  %v1668 = vadd.f32 %v1276, %v1472
  %v1669 = vadd.f32 %v1277, %v1473
  %v1670 = vadd.f32 %v1278, %v1474
  %v1671 = vadd.f32 %v1279, %v1475
  %v1672 = vadd.f32 %v1280, %v1476
  %v1673 = vadd.f32 %v1281, %v1477
  %v1674 = vadd.f32 %v1282, %v1478
  %v1675 = vadd.f32 %v1283, %v1479
  %v1676 = vadd.f32 %v1284, %v1480
  %v1677 = vadd.f32 %v1285, %v1481
  %v1678 = vadd.f32 %v1286, %v1482
  %v1679 = vadd.f32 %v1287, %v1483
  %v1680 = vadd.f32 %v1288, %v1484
  %v1681 = vadd.f32 %v1289, %v1485
  %v1682 = vadd.f32 %v1290, %v1486
  %v1683 = vadd.f32 %v1291, %v1487
  %v1684 = vadd.f32 %v1292, %v1488
  %v1685 = vadd.f32 %v1293, %v1489
  %v1686 = vadd.f32 %v1294, %v1490
  %v1687 = vadd.f32 %v1295, %v1491
  %v1688 = vadd.f32 %v1296, %v1492
  %v1689 = vadd.f32 %v1297, %v1493
  %v1690 = vadd.f32 %v1298, %v1494
  %v1691 = vadd.f32 %v1299, %v1495
  %v1692 = vadd.f32 %v1300, %v1496
  %v1693 = vadd.f32 %v1301, %v1497
  %v1694 = vadd.f32 %v1302, %v1498
  %v1695 = vadd.f32 %v1303, %v1499
  %v1696 = vadd.f32 %v1304, %v1500
  %v1697 = vadd.f32 %v1305, %v1501
  %v1698 = vadd.f32 %v1306, %v1502
  %v1699 = vadd.f32 %v1307, %v1503
  %v1700 = vadd.f32 %v1308, %v1504
  %v1701 = vadd.f32 %v1309, %v1505
  %v1702 = vadd.f32 %v1310, %v1506
  %v1703 = vadd.f32 %v1311, %v1507
  %v1704 = vadd.f32 %v1312, %v1508
  %v1705 = vadd.f32 %v1313, %v1509
  %v1706 = vadd.f32 %v1314, %v1510
  %v1707 = vadd.f32 %v1315, %v1511
  %v1708 = vadd.f32 %v1316, %v1512
  %v1709 = vadd.f32 %v1317, %v1513
  %v1710 = vadd.f32 %v1318, %v1514
  %v1711 = vadd.f32 %v1319, %v1515
  %v1712 = vadd.f32 %v1320, %v1516
  %v1713 = vadd.f32 %v1321, %v1517
  %v1714 = vadd.f32 %v1322, %v1518
  %v1715 = vadd.f32 %v1323, %v1519
  %v1716 = vadd.f32 %v1324, %v1520
  %v1717 = vadd.f32 %v1325, %v1521
  %v1718 = vadd.f32 %v1326, %v1522
  %v1719 = vadd.f32 %v1327, %v1523
  %v1720 = vadd.f32 %v1328, %v1524
  %v1721 = vadd.f32 %v1329, %v1525
  %v1722 = vadd.f32 %v1330, %v1526
  %v1723 = vadd.f32 %v1331, %v1527
  %v1724 = vadd.f32 %v1332, %v1528
  %v1725 = vadd.f32 %v1333, %v1529
  %v1726 = vadd.f32 %v1334, %v1530
  %v1727 = vadd.f32 %v1335, %v1531
  %v1728 = vadd.f32 %v1336, %v1532
  %v1729 = vadd.f32 %v1337, %v1533
  %v1730 = vadd.f32 %v1338, %v1534
  %v1731 = vadd.f32 %v1339, %v1535
  %v1732 = vadd.f32 %v1340, %v1536
  %v1733 = vadd.f32 %v1341, %v1537
  %v1734 = vadd.f32 %v1342, %v1538
  %v1735 = vadd.f32 %v1343, %v1539
  %v1736 = vadd.f32 %v1344, %v1540
  %v1737 = vadd.f32 %v1345, %v1541
  %v1738 = vadd.f32 %v1346, %v1542
  %v1739 = vadd.f32 %v1347, %v1543
  %v1740 = vadd.f32 %v1348, %v1544
  %v1741 = vadd.f32 %v1349, %v1545
  %v1742 = vadd.f32 %v1350, %v1546
  %v1743 = vadd.f32 %v1351, %v1547
  %v1744 = vadd.f32 %v1352, %v1548
  %v1745 = vadd.f32 %v1353, %v1549
  %v1746 = vadd.f32 %v1354, %v1550
  %v1747 = vadd.f32 %v1355, %v1551
  %v1748 = vadd.f32 %v1356, %v1552
  %v1749 = vadd.f32 %v1357, %v1553
  %v1750 = vadd.f32 %v1358, %v1554
  %v1751 = vadd.f32 %v1359, %v1555
  %v1752 = vadd.f32 %v1360, %v1556
  %v1753 = vadd.f32 %v1361, %v1557
  %v1754 = vadd.f32 %v1362, %v1558
  %v1755 = vadd.f32 %v1363, %v1559
  %v1756 = vadd.f32 %v1364, %v1560
  %v1757 = vadd.f32 %v1365, %v1561
  %v1758 = vadd.f32 %v1366, %v1562
  %v1759 = vadd.f32 %v1367, %v1563
  %v1760 = vadd.f32 %v1368, %v1564
  %v1761 = vadd.f32 %v1369, %v1565
  %v1762 = vadd.f32 %v1370, %v1566
  %v1763 = vadd.f32 %v1371, %v1567
  %v1764 = vadd.f32 %v1372, %v1568
  %v1765 = vadd.f32 %v1373, %v1569
  %v1766 = vadd.f32 %v1374, %v1570
  %v1767 = vadd.f32 %v1375, %v1571
  %v1768 = vadd.f32 %v1376, %v1572
  %v1769 = vadd.f32 %v1377, %v1573
  %v1770 = vadd.f32 %v1378, %v1574
  %v1771 = vadd.f32 %v1379, %v1575
  %v1772 = vadd.f32 %v1380, %v1576
  %v1773 = vadd.f32 %v1381, %v1577
  %v1774 = vadd.f32 %v1382, %v1578
  %v1775 = vadd.f32 %v1383, %v1579
  %v1776 = vadd.f32 %v1384, %v1580
  %v1777 = vadd.f32 %v1385, %v1581
  %v1778 = vadd.f32 %v1386, %v1582
  %v1779 = vadd.f32 %v1387, %v1583
  %v1780 = vadd.f32 %v1388, %v1584
  %v1781 = vadd.f32 %v1389, %v1585
  %v1782 = vadd.f32 %v1390, %v1586
  %v1783 = vadd.f32 %v1391, %v1587
  %v1784 = vadd.f32 %v1392, %v1588
  %v1785 = vadd.f32 %v1393, %v1589
  %v1786 = vadd.f32 %v1394, %v1590
  %v1787 = vadd.f32 %v1395, %v1591
  %v1788 = vadd.f32 %v1396, %v1592
  %v1789 = vadd.f32 %v1397, %v1593
  %v1790 = vadd.f32 %v1398, %v1594
  %v1791 = vadd.f32 %v1399, %v1595
  %v1792 = vadd.f32 %v1400, %v1596
  %v1793 = vadd.f32 %v1401, %v1597
  %v1794 = vadd.f32 %v1402, %v1598
  %v1795 = vadd.f32 %v1403, %v1599
  %v1796 = vadd.f32 %v1404, %v1600
  %v1797 = vadd.f32 %v1405, %v1601
  %v1798 = vadd.f32 %v1406, %v1602
  %v1799 = vadd.f32 %v1407, %v1603
  %v1800 = vadd.f32 %v1408, %v1604
  %v1801 = vadd.f32 %v1409, %v1605
  %v1802 = vadd.f32 %v1410, %v1606
  %v1803 = vadd.f32 %v1411, %v1607
  %v1804 = vadd.f32 %v1412, %v1608
  %v1805 = vadd.f32 %v1413, %v1609
  %v1806 = vadd.f32 %v1414, %v1610
  %v1807 = vadd.f32 %v1415, %v1611
  %v1808 = vadd.f32 %v1416, %v1612
  %v1809 = vadd.f32 %v1417, %v1613
  %v1810 = vadd.f32 %v1418, %v1614
  %v1811 = vadd.f32 %v1419, %v1615
  %v1812 = vadd.f32 %v1420, %v1616
  %v1813 = vadd.f32 %v1421, %v1617
  %v1814 = vadd.f32 %v1422, %v1618
  %v1815 = vadd.f32 %v1423, %v1619
  %v1816 = vadd.f32 %v1424, %v1620
  %v1817 = vadd.f32 %v1425, %v1621
  %v1818 = vadd.f32 %v1426, %v1622
  %v1819 = vadd.f32 %v1427, %v1623
  %v1820 = vadd.f32 %v1428, %v1624
  %v1821 = vadd.f32 %v1429, %v1625
  %v1822 = vadd.f32 %v1430, %v1626
  %v1823 = vadd.f32 %v1431, %v1627
  %1824 = vst [vmem:[%s4] sm:$0xff] %v1628
  %1825 = vst [vmem:[%s4 + $0x8] sm:$0xff] %v1629
  %1826 = vst [vmem:[%s4 + $0x10] sm:$0xff] %v1630
  %1827 = vst [vmem:[%s4 + $0x18] sm:$0xff] %v1631
  %1828 = vst [vmem:[%s4 + $0x20] sm:$0xff] %v1632
  %1829 = vst [vmem:[%s4 + $0x28] sm:$0xff] %v1633
  %1830 = vst [vmem:[%s4 + $0x30] sm:$0xff] %v1634
  %1831 = vst [vmem:[%s4 + $0x38] sm:$0xff] %v1635
  %1832 = vst [vmem:[%s4 + $0x40] sm:$0xff] %v1636
  %1833 = vst [vmem:[%s4 + $0x48] sm:$0xff] %v1637
  %1834 = vst [vmem:[%s4 + $0x50] sm:$0xff] %v1638
  %1835 = vst [vmem:[%s4 + $0x58] sm:$0xff] %v1639
  %1836 = vst [vmem:[%s4 + $0x60] sm:$0xff] %v1640
  %1837 = vst [vmem:[%s4 + $0x68] sm:$0xff] %v1641
  %1838 = vst [vmem:[%s4 + $0x70] sm:$0xff] %v1642
  %1839 = vst [vmem:[%s4 + $0x78] sm:$0xff] %v1643
  %1840 = vst [vmem:[%s4 + $0x80] sm:$0xff] %v1644
  %1841 = vst [vmem:[%s4 + $0x88] sm:$0xff] %v1645
  %1842 = vst [vmem:[%s4 + $0x90] sm:$0xff] %v1646
  %1843 = vst [vmem:[%s4 + $0x98] sm:$0xff] %v1647
  %1844 = vst [vmem:[%s4 + $0xa0] sm:$0xff] %v1648
  %1845 = vst [vmem:[%s4 + $0xa8] sm:$0xff] %v1649
  %1846 = vst [vmem:[%s4 + $0xb0] sm:$0xff] %v1650
  %1847 = vst [vmem:[%s4 + $0xb8] sm:$0xff] %v1651
  %1848 = vst [vmem:[%s4 + $0xc0] sm:$0xff] %v1652
  %1849 = vst [vmem:[%s4 + $0xc8] sm:$0xff] %v1653
  %1850 = vst [vmem:[%s4 + $0xd0] sm:$0xff] %v1654
  %1851 = vst [vmem:[%s4 + $0xd8] sm:$0xff] %v1655
  %1852 = vst [vmem:[%s4 + $0xe0] sm:$0xff] %v1656
  %1853 = vst [vmem:[%s4 + $0xe8] sm:$0xff] %v1657
  %1854 = vst [vmem:[%s4 + $0xf0] sm:$0xff] %v1658
  %1855 = vst [vmem:[%s4 + $0xf8] sm:$0xff] %v1659
  %1856 = vst [vmem:[%s4 + $0x100] sm:$0xff] %v1660
  %1857 = vst [vmem:[%s4 + $0x108] sm:$0xff] %v1661
  %1858 = vst [vmem:[%s4 + $0x110] sm:$0xff] %v1662
  %1859 = vst [vmem:[%s4 + $0x118] sm:$0xff] %v1663
  %1860 = vst [vmem:[%s4 + $0x120] sm:$0xff] %v1664
  %1861 = vst [vmem:[%s4 + $0x128] sm:$0xff] %v1665
  %1862 = vst [vmem:[%s4 + $0x130] sm:$0xff] %v1666
  %1863 = vst [vmem:[%s4 + $0x138] sm:$0xff] %v1667
  %1864 = vst [vmem:[%s4 + $0x140] sm:$0xff] %v1668
  %1865 = vst [vmem:[%s4 + $0x148] sm:$0xff] %v1669
  %1866 = vst [vmem:[%s4 + $0x150] sm:$0xff] %v1670
  %1867 = vst [vmem:[%s4 + $0x158] sm:$0xff] %v1671
  %1868 = vst [vmem:[%s4 + $0x160] sm:$0xff] %v1672
  %1869 = vst [vmem:[%s4 + $0x168] sm:$0xff] %v1673
  %1870 = vst [vmem:[%s4 + $0x170] sm:$0xff] %v1674
  %1871 = vst [vmem:[%s4 + $0x178] sm:$0xff] %v1675
  %1872 = vst [vmem:[%s4 + $0x180] sm:$0xff] %v1676
  %1873 = vst [vmem:[%s4 + $0x188] sm:$0xff] %v1677
  %1874 = vst [vmem:[%s4 + $0x190] sm:$0xff] %v1678
  %1875 = vst [vmem:[%s4 + $0x198] sm:$0xff] %v1679
  %1876 = vst [vmem:[%s4 + $0x1a0] sm:$0xff] %v1680
  %1877 = vst [vmem:[%s4 + $0x1a8] sm:$0xff] %v1681
  %1878 = vst [vmem:[%s4 + $0x1b0] sm:$0xff] %v1682
  %1879 = vst [vmem:[%s4 + $0x1b8] sm:$0xff] %v1683
  %1880 = vst [vmem:[%s4 + $0x1c0] sm:$0xff] %v1684
  %1881 = vst [vmem:[%s4 + $0x1c8] sm:$0xff] %v1685
  %1882 = vst [vmem:[%s4 + $0x1d0] sm:$0xff] %v1686
  %1883 = vst [vmem:[%s4 + $0x1d8] sm:$0xff] %v1687
  %1884 = vst [vmem:[%s4 + $0x1e0] sm:$0xff] %v1688
  %1885 = vst [vmem:[%s4 + $0x1e8] sm:$0xff] %v1689
  %1886 = vst [vmem:[%s4 + $0x1f0] sm:$0xff] %v1690
  %1887 = vst [vmem:[%s4 + $0x1f8] sm:$0xff] %v1691
  %1888 = vst [vmem:[%s4 + $0x200] sm:$0xff] %v1692
  %1889 = vst [vmem:[%s4 + $0x208] sm:$0xff] %v1693
  %1890 = vst [vmem:[%s4 + $0x210] sm:$0xff] %v1694
  %1891 = vst [vmem:[%s4 + $0x218] sm:$0xff] %v1695
  %1892 = vst [vmem:[%s4 + $0x220] sm:$0xff] %v1696
  %1893 = vst [vmem:[%s4 + $0x228] sm:$0xff] %v1697
  %1894 = vst [vmem:[%s4 + $0x230] sm:$0xff] %v1698
  %1895 = vst [vmem:[%s4 + $0x238] sm:$0xff] %v1699
  %1896 = vst [vmem:[%s4 + $0x240] sm:$0xff] %v1700
  %1897 = vst [vmem:[%s4 + $0x248] sm:$0xff] %v1701
  %1898 = vst [vmem:[%s4 + $0x250] sm:$0xff] %v1702
  %1899 = vst [vmem:[%s4 + $0x258] sm:$0xff] %v1703
  %1900 = vst [vmem:[%s4 + $0x260] sm:$0xff] %v1704
  %1901 = vst [vmem:[%s4 + $0x268] sm:$0xff] %v1705
  %1902 = vst [vmem:[%s4 + $0x270] sm:$0xff] %v1706
  %1903 = vst [vmem:[%s4 + $0x278] sm:$0xff] %v1707
  %1904 = vst [vmem:[%s4 + $0x280] sm:$0xff] %v1708
  %1905 = vst [vmem:[%s4 + $0x288] sm:$0xff] %v1709
  %1906 = vst [vmem:[%s4 + $0x290] sm:$0xff] %v1710
  %1907 = vst [vmem:[%s4 + $0x298] sm:$0xff] %v1711
  %1908 = vst [vmem:[%s4 + $0x2a0] sm:$0xff] %v1712
  %1909 = vst [vmem:[%s4 + $0x2a8] sm:$0xff] %v1713
  %1910 = vst [vmem:[%s4 + $0x2b0] sm:$0xff] %v1714
  %1911 = vst [vmem:[%s4 + $0x2b8] sm:$0xff] %v1715
  %1912 = vst [vmem:[%s4 + $0x2c0] sm:$0xff] %v1716
  %1913 = vst [vmem:[%s4 + $0x2c8] sm:$0xff] %v1717
  %1914 = vst [vmem:[%s4 + $0x2d0] sm:$0xff] %v1718
  %1915 = vst [vmem:[%s4 + $0x2d8] sm:$0xff] %v1719
  %1916 = vst [vmem:[%s4 + $0x2e0] sm:$0xff] %v1720
  %1917 = vst [vmem:[%s4 + $0x2e8] sm:$0xff] %v1721
  %1918 = vst [vmem:[%s4 + $0x2f0] sm:$0xff] %v1722
  %1919 = vst [vmem:[%s4 + $0x2f8] sm:$0xff] %v1723
  %1920 = vst [vmem:[%s4 + $0x300] sm:$0xff] %v1724
  %1921 = vst [vmem:[%s4 + $0x308] sm:$0xff] %v1725
  %1922 = vst [vmem:[%s4 + $0x310] sm:$0xff] %v1726
  %1923 = vst [vmem:[%s4 + $0x318] sm:$0xff] %v1727
  %1924 = vst [vmem:[%s4 + $0x320] sm:$0xff] %v1728
  %1925 = vst [vmem:[%s4 + $0x328] sm:$0xff] %v1729
  %1926 = vst [vmem:[%s4 + $0x330] sm:$0xff] %v1730
  %1927 = vst [vmem:[%s4 + $0x338] sm:$0xff] %v1731
  %1928 = vst [vmem:[%s4 + $0x340] sm:$0xff] %v1732
  %1929 = vst [vmem:[%s4 + $0x348] sm:$0xff] %v1733
  %1930 = vst [vmem:[%s4 + $0x350] sm:$0xff] %v1734
  %1931 = vst [vmem:[%s4 + $0x358] sm:$0xff] %v1735
  %1932 = vst [vmem:[%s4 + $0x360] sm:$0xff] %v1736
  %1933 = vst [vmem:[%s4 + $0x368] sm:$0xff] %v1737
  %1934 = vst [vmem:[%s4 + $0x370] sm:$0xff] %v1738
  %1935 = vst [vmem:[%s4 + $0x378] sm:$0xff] %v1739
  %1936 = vst [vmem:[%s4 + $0x380] sm:$0xff] %v1740
  %1937 = vst [vmem:[%s4 + $0x388] sm:$0xff] %v1741
  %1938 = vst [vmem:[%s4 + $0x390] sm:$0xff] %v1742
  %1939 = vst [vmem:[%s4 + $0x398] sm:$0xff] %v1743
  %1940 = vst [vmem:[%s4 + $0x3a0] sm:$0xff] %v1744
  %1941 = vst [vmem:[%s4 + $0x3a8] sm:$0xff] %v1745
  %1942 = vst [vmem:[%s4 + $0x3b0] sm:$0xff] %v1746
  %1943 = vst [vmem:[%s4 + $0x3b8] sm:$0xff] %v1747
  %1944 = vst [vmem:[%s4 + $0x3c0] sm:$0xff] %v1748
  %1945 = vst [vmem:[%s4 + $0x3c8] sm:$0xff] %v1749
  %1946 = vst [vmem:[%s4 + $0x3d0] sm:$0xff] %v1750
  %1947 = vst [vmem:[%s4 + $0x3d8] sm:$0xff] %v1751
  %1948 = vst [vmem:[%s4 + $0x3e0] sm:$0xff] %v1752
  %1949 = vst [vmem:[%s4 + $0x3e8] sm:$0xff] %v1753
  %1950 = vst [vmem:[%s4 + $0x3f0] sm:$0xff] %v1754
  %1951 = vst [vmem:[%s4 + $0x3f8] sm:$0xff] %v1755
  %1952 = vst [vmem:[%s4 + $0x400] sm:$0xff] %v1756
  %1953 = vst [vmem:[%s4 + $0x408] sm:$0xff] %v1757
  %1954 = vst [vmem:[%s4 + $0x410] sm:$0xff] %v1758
  %1955 = vst [vmem:[%s4 + $0x418] sm:$0xff] %v1759
  %1956 = vst [vmem:[%s4 + $0x420] sm:$0xff] %v1760
  %1957 = vst [vmem:[%s4 + $0x428] sm:$0xff] %v1761
  %1958 = vst [vmem:[%s4 + $0x430] sm:$0xff] %v1762
  %1959 = vst [vmem:[%s4 + $0x438] sm:$0xff] %v1763
  %1960 = vst [vmem:[%s4 + $0x440] sm:$0xff] %v1764
  %1961 = vst [vmem:[%s4 + $0x448] sm:$0xff] %v1765
  %1962 = vst [vmem:[%s4 + $0x450] sm:$0xff] %v1766
  %1963 = vst [vmem:[%s4 + $0x458] sm:$0xff] %v1767
  %1964 = vst [vmem:[%s4 + $0x460] sm:$0xff] %v1768
  %1965 = vst [vmem:[%s4 + $0x468] sm:$0xff] %v1769
  %1966 = vst [vmem:[%s4 + $0x470] sm:$0xff] %v1770
  %1967 = vst [vmem:[%s4 + $0x478] sm:$0xff] %v1771
  %1968 = vst [vmem:[%s4 + $0x480] sm:$0xff] %v1772
  %1969 = vst [vmem:[%s4 + $0x488] sm:$0xff] %v1773
  %1970 = vst [vmem:[%s4 + $0x490] sm:$0xff] %v1774
  %1971 = vst [vmem:[%s4 + $0x498] sm:$0xff] %v1775
  %1972 = vst [vmem:[%s4 + $0x4a0] sm:$0xff] %v1776
  %1973 = vst [vmem:[%s4 + $0x4a8] sm:$0xff] %v1777
  %1974 = vst [vmem:[%s4 + $0x4b0] sm:$0xff] %v1778
  %1975 = vst [vmem:[%s4 + $0x4b8] sm:$0xff] %v1779
  %1976 = vst [vmem:[%s4 + $0x4c0] sm:$0xff] %v1780
  %1977 = vst [vmem:[%s4 + $0x4c8] sm:$0xff] %v1781
  %1978 = vst [vmem:[%s4 + $0x4d0] sm:$0xff] %v1782
  %1979 = vst [vmem:[%s4 + $0x4d8] sm:$0xff] %v1783
  %1980 = vst [vmem:[%s4 + $0x4e0] sm:$0xff] %v1784
  %1981 = vst [vmem:[%s4 + $0x4e8] sm:$0xff] %v1785
  %1982 = vst [vmem:[%s4 + $0x4f0] sm:$0xff] %v1786
  %1983 = vst [vmem:[%s4 + $0x4f8] sm:$0xff] %v1787
  %1984 = vst [vmem:[%s4 + $0x500] sm:$0xff] %v1788
  %1985 = vst [vmem:[%s4 + $0x508] sm:$0xff] %v1789
  %1986 = vst [vmem:[%s4 + $0x510] sm:$0xff] %v1790
  %1987 = vst [vmem:[%s4 + $0x518] sm:$0xff] %v1791
  %1988 = vst [vmem:[%s4 + $0x520] sm:$0xff] %v1792
  %1989 = vst [vmem:[%s4 + $0x528] sm:$0xff] %v1793
  %1990 = vst [vmem:[%s4 + $0x530] sm:$0xff] %v1794
  %1991 = vst [vmem:[%s4 + $0x538] sm:$0xff] %v1795
  %1992 = vst [vmem:[%s4 + $0x540] sm:$0xff] %v1796
  %1993 = vst [vmem:[%s4 + $0x548] sm:$0xff] %v1797
  %1994 = vst [vmem:[%s4 + $0x550] sm:$0xff] %v1798
  %1995 = vst [vmem:[%s4 + $0x558] sm:$0xff] %v1799
  %1996 = vst [vmem:[%s4 + $0x560] sm:$0xff] %v1800
  %1997 = vst [vmem:[%s4 + $0x568] sm:$0xff] %v1801
  %1998 = vst [vmem:[%s4 + $0x570] sm:$0xff] %v1802
  %1999 = vst [vmem:[%s4 + $0x578] sm:$0xff] %v1803
  %2000 = vst [vmem:[%s4 + $0x580] sm:$0xff] %v1804
  %2001 = vst [vmem:[%s4 + $0x588] sm:$0xff] %v1805
  %2002 = vst [vmem:[%s4 + $0x590] sm:$0xff] %v1806
  %2003 = vst [vmem:[%s4 + $0x598] sm:$0xff] %v1807
  %2004 = vst [vmem:[%s4 + $0x5a0] sm:$0xff] %v1808
  %2005 = vst [vmem:[%s4 + $0x5a8] sm:$0xff] %v1809
  %2006 = vst [vmem:[%s4 + $0x5b0] sm:$0xff] %v1810
  %2007 = vst [vmem:[%s4 + $0x5b8] sm:$0xff] %v1811
  %2008 = vst [vmem:[%s4 + $0x5c0] sm:$0xff] %v1812
  %2009 = vst [vmem:[%s4 + $0x5c8] sm:$0xff] %v1813
  %2010 = vst [vmem:[%s4 + $0x5d0] sm:$0xff] %v1814
  %2011 = vst [vmem:[%s4 + $0x5d8] sm:$0xff] %v1815
  %2012 = vst [vmem:[%s4 + $0x5e0] sm:$0xff] %v1816
  %2013 = vst [vmem:[%s4 + $0x5e8] sm:$0xff] %v1817
  %2014 = vst [vmem:[%s4 + $0x5f0] sm:$0xff] %v1818
  %2015 = vst [vmem:[%s4 + $0x5f8] sm:$0xff] %v1819
  %2016 = vst [vmem:[%s4 + $0x600] sm:$0xff] %v1820
  %2017 = vst [vmem:[%s4 + $0x608] sm:$0xff] %v1821
  %2018 = vst [vmem:[%s4 + $0x610] sm:$0xff] %v1822
  %2019 = vst [vmem:[%s4 + $0x618] sm:$0xff] %v1823
  // Predicated region
  $region18: #{batchnorm_add.1} parent=0 // pred_check
    _
  $region19: #{batchnorm_add.1} parent=0 // pred_check_branch
    %2021 = sbr.rel (0) target = $region21
  $region20: #{batchnorm_add.1} parent=0 // pred_region
    _
  $region21: #{batchnorm_add.1} parent=0 // pred_fallthru
    _
  // Predicated region
  $region22: #{batchnorm_add.1} parent=0 // pred_check
    _
  $region23: #{batchnorm_add.1} parent=0 // pred_check_branch
    %2023 = sbr.rel (0) target = $region25
  $region24: #{batchnorm_add.1} parent=0 // pred_region
    _
  $region25: #{batchnorm_add.1} parent=0 // pred_fallthru
    _

</llo_original>
